<compile_context>
chip_gen: v6e
topology: v6e:2x2x1
jax: 0.10.0
libtpu: 0.0.40
codegen_flags: <defaults>
</compile_context>

<pallas_src>
import functools

import numpy as np
import jax
import jax.numpy as jnp
from jax.experimental import pallas as pl
from jax.experimental.pallas import tpu as pltpu

EPS = 1e-5  # nn.BatchNorm2d default eps


def _basic_block_kernel(x_ref, band1_ref, band2_ref, g1_ref, be1_ref,
                        g2_ref, be2_ref, out_ref, lhs_ref, *, N, C, H, W):
    NH = N * H
    WC = W * C

    # Per-channel reduce+broadcast matrix, built in-kernel (VPU iota/compare;
    # avoids DMA-ing a 64 KiB constant).  cm[j, q] = 1/(N*H*W) iff j, q map to
    # the same channel in the lane-dense (x, channel) column layout.
    ci = jax.lax.broadcasted_iota(jnp.int32, (WC, WC), 0) % C
    cj = jax.lax.broadcasted_iota(jnp.int32, (WC, WC), 1) % C
    cm = jnp.where(ci == cj, 1.0 / float(N * H * W), 0.0).astype(jnp.float32)

    def fill_shifted(src_ref, c0):
        # Fill the dy=0 and dy=2 K blocks of the im2col LHS with the vertically
        # reflected/shifted rows of src_ref[:, c0:c0+WC].  Full-lane stores only;
        # the horizontal reflect is already folded into the band matrices.
        for n in range(N):
            r0 = n * H
            # dy = 0 block: padded rows y   -> [src row 1, src rows 0..H-2]
            lhs_ref[r0:r0 + 1, 0:WC] = src_ref[r0 + 1:r0 + 2, c0:c0 + WC]
            lhs_ref[r0 + 1:r0 + H, 0:WC] = src_ref[r0:r0 + H - 1, c0:c0 + WC]
            # dy = 2 block: padded rows y+2 -> [src rows 1..H-1, src row H-2]
            lhs_ref[r0:r0 + H - 1, 2 * WC:3 * WC] = \
                src_ref[r0 + 1:r0 + H, c0:c0 + WC]
            lhs_ref[r0 + H - 1:r0 + H, 2 * WC:3 * WC] = \
                src_ref[r0 + H - 2:r0 + H - 1, c0:c0 + WC]

    def conv3x3(band_ref):
        # One MXU pass per conv: (N*H, 3*W*C) @ (3*W*C, W*C), batched over N.
        return jnp.dot(lhs_ref[...], band_ref[...],
                       preferred_element_type=jnp.float32)

    def batchnorm(acc, g_ref, b_ref):
        # Biased batch statistics folded into a per-channel scale/shift.  The
        # single (2, WC) @ (WC, WC) matmul does the per-channel reduce AND the
        # broadcast back to the lane-dense column layout in one MXU pass.
        cs = jnp.sum(acc, axis=0, keepdims=True)            # (1, WC) sum
        css = jnp.sum(acc * acc, axis=0, keepdims=True)      # (1, WC) sum of sq
        stats = jnp.concatenate([cs, css], axis=0)           # (2, WC)
        red = jnp.dot(stats, cm, preferred_element_type=jnp.float32)
        mean = red[0:1, :]
        var = red[1:2, :] - mean * mean
        scale = g_ref[...] * jax.lax.rsqrt(var + EPS)
        shift = b_ref[...] - mean * scale
        return acc * scale + shift

    # ---- conv1 -> bn1 -> relu ------------------------------------------------
    x = x_ref[...]                                  # identity branch, (N*H, WC)
    lhs_ref[:, WC:2 * WC] = x                       # dy = 1 (identity) K block
    fill_shifted(x_ref, 0)
    h = jnp.maximum(batchnorm(conv3x3(band1_ref), g1_ref, be1_ref), 0.0)

    # ---- conv2 -> bn2 -> +identity -> relu ------------------------------------
    lhs_ref[:, WC:2 * WC] = h                       # reuse scratch; row source
    fill_shifted(lhs_ref, WC)                       # shifts read the h block
    y = batchnorm(conv3x3(band2_ref), g2_ref, be2_ref) + x
    out_ref[...] = jnp.maximum(y, 0.0)


def _make_band(w_oihw, W):
    """(Cout, Cin, 3, 3) OIHW weights -> (3*W*Cin, W*Cout) band matrix with the
    horizontal reflect padding folded in:
      band[dy*W*Cin + xw*Cin + c, x*Cout + o] =
          sum over dx in {0,1,2} with reflect(x+dx) == xw of w[o, c, dy, dx].
    Host-side precompute; runs once per weight set (hoisted out of the forward).
    """
    w = np.asarray(w_oihw, dtype=np.float32)
    Cout, Cin, KH, KW = w.shape
    assert (KH, KW) == (3, 3)

    def refl(s):  # reflect of padded column index s (pad = 1)
        if s == 0:
            return 1
        if s == W + 1:
            return W - 2
        return s - 1

    band = np.zeros((3, W * Cin, W * Cout), np.float32)
    for dy in range(3):
        for dx in range(3):
            wt = w[:, :, dy, dx].T                           # (Cin, Cout)
            for x in range(W):
                xw = refl(x + dx)
                band[dy, xw * Cin:(xw + 1) * Cin,
                     x * Cout:(x + 1) * Cout] += wt
    return jnp.asarray(band.reshape(3 * W * Cin, W * Cout))


def prepare_basic_block_params(w1, g1, b1, w2, g2, b2, H, W):
    """Once-per-weight-set precompute (kept off the per-forward path)."""
    Cout, Cin = w1.shape[0], w1.shape[1]
    assert Cout == Cin, "residual path (downsample=None) requires inplanes == planes"
    assert H >= 3 and W >= 3, "reflect padding of 1 requires H, W >= 3"
    WC = W * Cout
    tile = lambda v: jnp.tile(jnp.asarray(v, jnp.float32), W).reshape(1, WC)
    return (_make_band(w1, W), _make_band(w2, W),
            tile(g1), tile(b1), tile(g2), tile(b2))


def _full_spec(shape):
    # Whole-array block (everything here fits comfortably in VMEM).
    return pl.BlockSpec(shape, lambda i: (0,) * len(shape))


@jax.jit
def basic_block_forward(x_nchw, band1, band2, g1_row, b1_row, g2_row, b2_row):
    """BasicBlock forward (stride=1, downsample=None). x_nchw: (N, C, H, W) f32."""
    N, C, H, W = x_nchw.shape
    WC = W * C

    # NCHW -> NHWC -> lane-dense (N*H, W*C) slab (contiguous reshape).
    x2d = jnp.transpose(x_nchw, (0, 2, 3, 1)).reshape(N * H, WC).astype(jnp.float32)

    kernel = functools.partial(_basic_block_kernel, N=N, C=C, H=H, W=W)

    # TODO(synk): for realistic (large) N/H/C, split the grid over N*H tiles with
    # dimension_semantics=("parallel",) plus a two-phase BatchNorm reduction
    # (and switch the band formulation to dense im2col) so v7x's second
    # TensorCore and 64 MiB VMEM limits are respected; at this toy size one
    # fused single-core invocation is fastest.
    out2d = pl.pallas_call(
        kernel,
        out_shape=jax.ShapeDtypeStruct((N * H, WC), jnp.float32),
        grid=(1,),
        in_specs=[_full_spec(x2d.shape), _full_spec(band1.shape),
                  _full_spec(band2.shape),
                  _full_spec(g1_row.shape), _full_spec(b1_row.shape),
                  _full_spec(g2_row.shape), _full_spec(b2_row.shape)],
        out_specs=_full_spec((N * H, WC)),
        scratch_shapes=[pltpu.VMEM((N * H, 3 * WC), jnp.float32)],  # im2col LHS
        compiler_params=pltpu.CompilerParams(dimension_semantics=("arbitrary",)),
    )(x2d, band1, band2, g1_row, b1_row, g2_row, b2_row)

    return jnp.transpose(out2d.reshape(N, H, W, C), (0, 3, 1, 2))


def _reference_forward(x, w1, g1, b1, w2, g2, b2):
    """Pure-JAX reference matching the PyTorch BasicBlock (NCHW)."""
    def conv(inp, w):
        xp = jnp.pad(inp, ((0, 0), (0, 0), (1, 1), (1, 1)), mode='reflect')
        return jax.lax.conv_general_dilated(
            xp, w, window_strides=(1, 1), padding='VALID',
            dimension_numbers=('NCHW', 'OIHW', 'NCHW'))

    def bn(inp, g, b):
        mean = jnp.mean(inp, axis=(0, 2, 3), keepdims=True)
        var = jnp.mean((inp - mean) ** 2, axis=(0, 2, 3), keepdims=True)
        return ((inp - mean) * jax.lax.rsqrt(var + EPS)
                * g.reshape(1, -1, 1, 1) + b.reshape(1, -1, 1, 1))

    h = jax.nn.relu(bn(conv(x, w1), g1, b1))
    return jax.nn.relu(bn(conv(h, w2), g2, b2) + x)


if __name__ == "__main__":
    key = jax.random.PRNGKey(0)
    k_x, k_w1, k_w2, k_g1, k_b1, k_g2, k_b2 = jax.random.split(key, 7)

    # BasicBlock(inplanes=8, planes=8, stride=1, downsample=None)
    N, C, H, W = 2, 8, 16, 16
    x = jax.random.normal(k_x, (N, C, H, W), jnp.float32)

    w1 = jax.random.normal(k_w1, (C, C, 3, 3), jnp.float32) * 0.1   # conv1 weight
    w2 = jax.random.normal(k_w2, (C, C, 3, 3), jnp.float32) * 0.1   # conv2 weight
    g1 = 1.0 + 0.1 * jax.random.normal(k_g1, (C,), jnp.float32)     # bn1 gamma
    b1 = 0.1 * jax.random.normal(k_b1, (C,), jnp.float32)           # bn1 beta
    g2 = 1.0 + 0.1 * jax.random.normal(k_g2, (C,), jnp.float32)     # bn2 gamma
    b2 = 0.1 * jax.random.normal(k_b2, (C,), jnp.float32)           # bn2 beta

    params = prepare_basic_block_params(w1, g1, b1, w2, g2, b2, H, W)
    out = jax.block_until_ready(basic_block_forward(x, *params))
    ref = jax.block_until_ready(_reference_forward(x, w1, g1, b1, w2, g2, b2))

    assert out.shape == (N, C, H, W)
    max_err = float(jnp.max(jnp.abs(out - ref)))
    assert jnp.allclose(out, ref, atol=1e-4, rtol=1e-4), max_err
    print("KERNEL_OK")
</pallas_src>

<mosaic_0001>
module attributes {stable_mosaic.version = 11 : i64} {
  func.func @_basic_block_kernel(%arg0: i32, %arg1: memref<32x128xf32, #tpu.memory_space<vmem>>, %arg2: memref<384x128xf32, #tpu.memory_space<vmem>>, %arg3: memref<384x128xf32, #tpu.memory_space<vmem>>, %arg4: memref<1x128xf32, #tpu.memory_space<vmem>>, %arg5: memref<1x128xf32, #tpu.memory_space<vmem>>, %arg6: memref<1x128xf32, #tpu.memory_space<vmem>>, %arg7: memref<1x128xf32, #tpu.memory_space<vmem>>, %arg8: memref<32x128xf32, #tpu.memory_space<vmem>>, %arg9: memref<32x384xf32, #tpu.memory_space<vmem>>) attributes {dimension_semantics = [#tpu.dimension_semantics<arbitrary>], iteration_bounds = array<i64: 1>, scalar_prefetch = 0 : i64, scratch_operands = 1 : i64, tpu.core_type = #tpu.core_type<tc>, window_params = [{pipeline_mode = #tpu.pipeline_mode<synchronous>, transform_indices = @transform_0, window_bounds = array<i64: 32, 128>}, {pipeline_mode = #tpu.pipeline_mode<synchronous>, transform_indices = @transform_1, window_bounds = array<i64: 384, 128>}, {pipeline_mode = #tpu.pipeline_mode<synchronous>, transform_indices = @transform_2, window_bounds = array<i64: 384, 128>}, {pipeline_mode = #tpu.pipeline_mode<synchronous>, transform_indices = @transform_3, window_bounds = array<i64: 1, 128>}, {pipeline_mode = #tpu.pipeline_mode<synchronous>, transform_indices = @transform_4, window_bounds = array<i64: 1, 128>}, {pipeline_mode = #tpu.pipeline_mode<synchronous>, transform_indices = @transform_5, window_bounds = array<i64: 1, 128>}, {pipeline_mode = #tpu.pipeline_mode<synchronous>, transform_indices = @transform_6, window_bounds = array<i64: 1, 128>}, {pipeline_mode = #tpu.pipeline_mode<synchronous>, transform_indices = @transform_7, window_bounds = array<i64: 32, 128>}]} {
    %0 = tpu.iota {dimensions = array<i32: 0>} : vector<128x128xi32>
    %c8_i32 = arith.constant 8 : i32
    %c0_i32 = arith.constant 0 : i32
    %1 = arith.cmpi eq, %c8_i32, %c0_i32 : i32
    %c1_i32 = arith.constant 1 : i32
    %2 = arith.select %1, %c1_i32, %c8_i32 : i32
    %3 = vector.broadcast %2 : i32 to vector<128x128xi32>
    %4 = arith.remsi %0, %3 : vector<128x128xi32>
    %c0_i32_0 = arith.constant 0 : i32
    %5 = vector.broadcast %c0_i32_0 : i32 to vector<128x128xi32>
    %6 = arith.cmpi ne, %4, %5 : vector<128x128xi32>
    %c0_i32_1 = arith.constant 0 : i32
    %7 = vector.broadcast %c0_i32_1 : i32 to vector<128x128xi32>
    %8 = arith.cmpi slt, %4, %7 : vector<128x128xi32>
    %c0_i32_2 = arith.constant 0 : i32
    %9 = arith.cmpi slt, %2, %c0_i32_2 : i32
    %10 = vector.broadcast %9 : i1 to vector<128x128xi1>
    %11 = vector.broadcast %10 : vector<128x128xi1> to vector<128x128xi1>
    %12 = arith.xori %8, %11 : vector<128x128xi1>
    %13 = arith.andi %12, %6 : vector<128x128xi1>
    %14 = vector.broadcast %2 : i32 to vector<128x128xi32>
    %15 = arith.addi %4, %14 : vector<128x128xi32>
    %16 = arith.select %13, %15, %4 : vector<128x128xi1>, vector<128x128xi32>
    %17 = tpu.iota {dimensions = array<i32: 1>} : vector<128x128xi32>
    %c8_i32_3 = arith.constant 8 : i32
    %c0_i32_4 = arith.constant 0 : i32
    %18 = arith.cmpi eq, %c8_i32_3, %c0_i32_4 : i32
    %c1_i32_5 = arith.constant 1 : i32
    %19 = arith.select %18, %c1_i32_5, %c8_i32_3 : i32
    %20 = vector.broadcast %19 : i32 to vector<128x128xi32>
    %21 = arith.remsi %17, %20 : vector<128x128xi32>
    %c0_i32_6 = arith.constant 0 : i32
    %22 = vector.broadcast %c0_i32_6 : i32 to vector<128x128xi32>
    %23 = arith.cmpi ne, %21, %22 : vector<128x128xi32>
    %c0_i32_7 = arith.constant 0 : i32
    %24 = vector.broadcast %c0_i32_7 : i32 to vector<128x128xi32>
    %25 = arith.cmpi slt, %21, %24 : vector<128x128xi32>
    %c0_i32_8 = arith.constant 0 : i32
    %26 = arith.cmpi slt, %19, %c0_i32_8 : i32
    %27 = vector.broadcast %26 : i1 to vector<128x128xi1>
    %28 = vector.broadcast %27 : vector<128x128xi1> to vector<128x128xi1>
    %29 = arith.xori %25, %28 : vector<128x128xi1>
    %30 = arith.andi %29, %23 : vector<128x128xi1>
    %31 = vector.broadcast %19 : i32 to vector<128x128xi32>
    %32 = arith.addi %21, %31 : vector<128x128xi32>
    %33 = arith.select %30, %32, %21 : vector<128x128xi1>, vector<128x128xi32>
    %34 = arith.cmpi eq, %16, %33 : vector<128x128xi32>
    %cst = arith.constant 0.001953125 : f32
    %cst_9 = arith.constant 0.000000e+00 : f32
    %35 = vector.broadcast %cst : f32 to vector<128x128xf32>
    %36 = vector.broadcast %cst_9 : f32 to vector<128x128xf32>
    %37 = arith.select %34, %35, %36 : vector<128x128xi1>, vector<128x128xf32>
    %c0 = arith.constant 0 : index
    %c0_10 = arith.constant 0 : index
    %38 = vector.load %arg1[%c0, %c0_10] : memref<32x128xf32, #tpu.memory_space<vmem>>, vector<32x128xf32>
    %c0_11 = arith.constant 0 : index
    %c128 = arith.constant 128 : index
    %39 = vector.load %arg9[%c0_11, %c128] : memref<32x384xf32, #tpu.memory_space<vmem>>, vector<32x128xf32>
    tpu.vector_store %arg9[%c0_11, %c128], %38 {strides = array<i32>} : memref<32x384xf32, #tpu.memory_space<vmem>>, vector<32x128xf32>,
    %c1 = arith.constant 1 : index
    %c0_12 = arith.constant 0 : index
    %40 = vector.load %arg1[%c1, %c0_12] : memref<32x128xf32, #tpu.memory_space<vmem>>, vector<1x128xf32>
    %c0_13 = arith.constant 0 : index
    %c0_14 = arith.constant 0 : index
    %41 = vector.load %arg9[%c0_13, %c0_14] : memref<32x384xf32, #tpu.memory_space<vmem>>, vector<1x128xf32>
    tpu.vector_store %arg9[%c0_13, %c0_14], %40 {strides = array<i32>} : memref<32x384xf32, #tpu.memory_space<vmem>>, vector<1x128xf32>,
    %c0_15 = arith.constant 0 : index
    %c0_16 = arith.constant 0 : index
    %42 = vector.load %arg1[%c0_15, %c0_16] : memref<32x128xf32, #tpu.memory_space<vmem>>, vector<15x128xf32>
    %c1_17 = arith.constant 1 : index
    %c0_18 = arith.constant 0 : index
    %43 = vector.load %arg9[%c1_17, %c0_18] : memref<32x384xf32, #tpu.memory_space<vmem>>, vector<15x128xf32>
    tpu.vector_store %arg9[%c1_17, %c0_18], %42 {strides = array<i32>} : memref<32x384xf32, #tpu.memory_space<vmem>>, vector<15x128xf32>,
    %c1_19 = arith.constant 1 : index
    %c0_20 = arith.constant 0 : index
    %44 = vector.load %arg1[%c1_19, %c0_20] : memref<32x128xf32, #tpu.memory_space<vmem>>, vector<15x128xf32>
    %c0_21 = arith.constant 0 : index
    %c256 = arith.constant 256 : index
    %45 = vector.load %arg9[%c0_21, %c256] : memref<32x384xf32, #tpu.memory_space<vmem>>, vector<15x128xf32>
    tpu.vector_store %arg9[%c0_21, %c256], %44 {strides = array<i32>} : memref<32x384xf32, #tpu.memory_space<vmem>>, vector<15x128xf32>,
    %c14 = arith.constant 14 : index
    %c0_22 = arith.constant 0 : index
    %46 = vector.load %arg1[%c14, %c0_22] : memref<32x128xf32, #tpu.memory_space<vmem>>, vector<1x128xf32>
    %c15 = arith.constant 15 : index
    %c256_23 = arith.constant 256 : index
    %47 = vector.load %arg9[%c15, %c256_23] : memref<32x384xf32, #tpu.memory_space<vmem>>, vector<1x128xf32>
    tpu.vector_store %arg9[%c15, %c256_23], %46 {strides = array<i32>} : memref<32x384xf32, #tpu.memory_space<vmem>>, vector<1x128xf32>,
    %c17 = arith.constant 17 : index
    %c0_24 = arith.constant 0 : index
    %48 = vector.load %arg1[%c17, %c0_24] : memref<32x128xf32, #tpu.memory_space<vmem>>, vector<1x128xf32>
    %c16 = arith.constant 16 : index
    %c0_25 = arith.constant 0 : index
    %49 = vector.load %arg9[%c16, %c0_25] : memref<32x384xf32, #tpu.memory_space<vmem>>, vector<1x128xf32>
    tpu.vector_store %arg9[%c16, %c0_25], %48 {strides = array<i32>} : memref<32x384xf32, #tpu.memory_space<vmem>>, vector<1x128xf32>,
    %c16_26 = arith.constant 16 : index
    %c0_27 = arith.constant 0 : index
    %50 = vector.load %arg1[%c16_26, %c0_27] : memref<32x128xf32, #tpu.memory_space<vmem>>, vector<15x128xf32>
    %c17_28 = arith.constant 17 : index
    %c0_29 = arith.constant 0 : index
    %51 = vector.load %arg9[%c17_28, %c0_29] : memref<32x384xf32, #tpu.memory_space<vmem>>, vector<15x128xf32>
    tpu.vector_store %arg9[%c17_28, %c0_29], %50 {strides = array<i32>} : memref<32x384xf32, #tpu.memory_space<vmem>>, vector<15x128xf32>,
    %c17_30 = arith.constant 17 : index
    %c0_31 = arith.constant 0 : index
    %52 = vector.load %arg1[%c17_30, %c0_31] : memref<32x128xf32, #tpu.memory_space<vmem>>, vector<15x128xf32>
    %c16_32 = arith.constant 16 : index
    %c256_33 = arith.constant 256 : index
    %53 = vector.load %arg9[%c16_32, %c256_33] : memref<32x384xf32, #tpu.memory_space<vmem>>, vector<15x128xf32>
    tpu.vector_store %arg9[%c16_32, %c256_33], %52 {strides = array<i32>} : memref<32x384xf32, #tpu.memory_space<vmem>>, vector<15x128xf32>,
    %c30 = arith.constant 30 : index
    %c0_34 = arith.constant 0 : index
    %54 = vector.load %arg1[%c30, %c0_34] : memref<32x128xf32, #tpu.memory_space<vmem>>, vector<1x128xf32>
    %c31 = arith.constant 31 : index
    %c256_35 = arith.constant 256 : index
    %55 = vector.load %arg9[%c31, %c256_35] : memref<32x384xf32, #tpu.memory_space<vmem>>, vector<1x128xf32>
    tpu.vector_store %arg9[%c31, %c256_35], %54 {strides = array<i32>} : memref<32x384xf32, #tpu.memory_space<vmem>>, vector<1x128xf32>,
    %c0_36 = arith.constant 0 : index
    %c0_37 = arith.constant 0 : index
    %56 = vector.load %arg9[%c0_36, %c0_37] : memref<32x384xf32, #tpu.memory_space<vmem>>, vector<32x384xf32>
    %c0_38 = arith.constant 0 : index
    %c0_39 = arith.constant 0 : index
    %57 = vector.load %arg2[%c0_38, %c0_39] : memref<384x128xf32, #tpu.memory_space<vmem>>, vector<384x128xf32>
    %cst_40 = arith.constant dense<0.000000e+00> : vector<32x128xf32>
    %58 = tpu.matmul %56, %57, %cst_40 {dimension_numbers = #tpu.dot_dimension_numbers<[1], [0], [0], [1], [0, 0, 1, 1], [], []>} : vector<32x384xf32>, vector<384x128xf32>, vector<32x128xf32> -> vector<32x128xf32>
    %cst_41 = arith.constant dense<0.000000e+00> : vector<128xf32>
    %59 = vector.multi_reduction <add>, %58, %cst_41 [0] : vector<32x128xf32> to vector<128xf32>
    %60 = vector.shape_cast %59 : vector<128xf32> to vector<1x128xf32>
    %61 = arith.mulf %58, %58 : vector<32x128xf32>
    %cst_42 = arith.constant dense<0.000000e+00> : vector<128xf32>
    %62 = vector.multi_reduction <add>, %61, %cst_42 [0] : vector<32x128xf32> to vector<128xf32>
    %63 = vector.shape_cast %62 : vector<128xf32> to vector<1x128xf32>
    %64 = tpu.concatenate %60, %63 in 0 : vector<1x128xf32>, vector<1x128xf32> -> vector<2x128xf32>
    %cst_43 = arith.constant dense<0.000000e+00> : vector<2x128xf32>
    %65 = tpu.matmul %64, %37, %cst_43 {dimension_numbers = #tpu.dot_dimension_numbers<[1], [0], [0], [1], [0, 0, 1, 1], [], []>} : vector<2x128xf32>, vector<128x128xf32>, vector<2x128xf32> -> vector<2x128xf32>
    %66 = vector.extract_strided_slice %65 {offsets = [0, 0], sizes = [1, 128], strides = [1, 1]} : vector<2x128xf32> to vector<1x128xf32>
    %67 = vector.extract_strided_slice %65 {offsets = [1, 0], sizes = [1, 128], strides = [1, 1]} : vector<2x128xf32> to vector<1x128xf32>
    %68 = arith.mulf %66, %66 : vector<1x128xf32>
    %69 = arith.subf %67, %68 : vector<1x128xf32>
    %c0_44 = arith.constant 0 : index
    %c0_45 = arith.constant 0 : index
    %70 = vector.load %arg4[%c0_44, %c0_45] : memref<1x128xf32, #tpu.memory_space<vmem>>, vector<1x128xf32>
    %cst_46 = arith.constant 9.99999974E-6 : f32
    %71 = vector.broadcast %cst_46 : f32 to vector<1x128xf32>
    %72 = arith.addf %69, %71 : vector<1x128xf32>
    %73 = math.rsqrt %72 : vector<1x128xf32>
    %74 = arith.mulf %70, %73 : vector<1x128xf32>
    %c0_47 = arith.constant 0 : index
    %c0_48 = arith.constant 0 : index
    %75 = vector.load %arg5[%c0_47, %c0_48] : memref<1x128xf32, #tpu.memory_space<vmem>>, vector<1x128xf32>
    %76 = arith.mulf %66, %74 : vector<1x128xf32>
    %77 = arith.subf %75, %76 : vector<1x128xf32>
    %78 = vector.broadcast %74 : vector<1x128xf32> to vector<32x128xf32>
    %79 = arith.mulf %58, %78 : vector<32x128xf32>
    %80 = vector.broadcast %77 : vector<1x128xf32> to vector<32x128xf32>
    %81 = arith.addf %79, %80 : vector<32x128xf32>
    %cst_49 = arith.constant 0.000000e+00 : f32
    %82 = vector.broadcast %cst_49 : f32 to vector<32x128xf32>
    %83 = arith.maximumf %81, %82 : vector<32x128xf32>
    %c0_50 = arith.constant 0 : index
    %c128_51 = arith.constant 128 : index
    %84 = vector.load %arg9[%c0_50, %c128_51] : memref<32x384xf32, #tpu.memory_space<vmem>>, vector<32x128xf32>
    tpu.vector_store %arg9[%c0_50, %c128_51], %83 {strides = array<i32>} : memref<32x384xf32, #tpu.memory_space<vmem>>, vector<32x128xf32>,
    %c1_52 = arith.constant 1 : index
    %c128_53 = arith.constant 128 : index
    %85 = vector.load %arg9[%c1_52, %c128_53] : memref<32x384xf32, #tpu.memory_space<vmem>>, vector<1x128xf32>
    %c0_54 = arith.constant 0 : index
    %c0_55 = arith.constant 0 : index
    %86 = vector.load %arg9[%c0_54, %c0_55] : memref<32x384xf32, #tpu.memory_space<vmem>>, vector<1x128xf32>
    tpu.vector_store %arg9[%c0_54, %c0_55], %85 {strides = array<i32>} : memref<32x384xf32, #tpu.memory_space<vmem>>, vector<1x128xf32>,
    %c0_56 = arith.constant 0 : index
    %c128_57 = arith.constant 128 : index
    %87 = vector.load %arg9[%c0_56, %c128_57] : memref<32x384xf32, #tpu.memory_space<vmem>>, vector<15x128xf32>
    %c1_58 = arith.constant 1 : index
    %c0_59 = arith.constant 0 : index
    %88 = vector.load %arg9[%c1_58, %c0_59] : memref<32x384xf32, #tpu.memory_space<vmem>>, vector<15x128xf32>
    tpu.vector_store %arg9[%c1_58, %c0_59], %87 {strides = array<i32>} : memref<32x384xf32, #tpu.memory_space<vmem>>, vector<15x128xf32>,
    %c1_60 = arith.constant 1 : index
    %c128_61 = arith.constant 128 : index
    %89 = vector.load %arg9[%c1_60, %c128_61] : memref<32x384xf32, #tpu.memory_space<vmem>>, vector<15x128xf32>
    %c0_62 = arith.constant 0 : index
    %c256_63 = arith.constant 256 : index
    %90 = vector.load %arg9[%c0_62, %c256_63] : memref<32x384xf32, #tpu.memory_space<vmem>>, vector<15x128xf32>
    tpu.vector_store %arg9[%c0_62, %c256_63], %89 {strides = array<i32>} : memref<32x384xf32, #tpu.memory_space<vmem>>, vector<15x128xf32>,
    %c14_64 = arith.constant 14 : index
    %c128_65 = arith.constant 128 : index
    %91 = vector.load %arg9[%c14_64, %c128_65] : memref<32x384xf32, #tpu.memory_space<vmem>>, vector<1x128xf32>
    %c15_66 = arith.constant 15 : index
    %c256_67 = arith.constant 256 : index
    %92 = vector.load %arg9[%c15_66, %c256_67] : memref<32x384xf32, #tpu.memory_space<vmem>>, vector<1x128xf32>
    tpu.vector_store %arg9[%c15_66, %c256_67], %91 {strides = array<i32>} : memref<32x384xf32, #tpu.memory_space<vmem>>, vector<1x128xf32>,
    %c17_68 = arith.constant 17 : index
    %c128_69 = arith.constant 128 : index
    %93 = vector.load %arg9[%c17_68, %c128_69] : memref<32x384xf32, #tpu.memory_space<vmem>>, vector<1x128xf32>
    %c16_70 = arith.constant 16 : index
    %c0_71 = arith.constant 0 : index
    %94 = vector.load %arg9[%c16_70, %c0_71] : memref<32x384xf32, #tpu.memory_space<vmem>>, vector<1x128xf32>
    tpu.vector_store %arg9[%c16_70, %c0_71], %93 {strides = array<i32>} : memref<32x384xf32, #tpu.memory_space<vmem>>, vector<1x128xf32>,
    %c16_72 = arith.constant 16 : index
    %c128_73 = arith.constant 128 : index
    %95 = vector.load %arg9[%c16_72, %c128_73] : memref<32x384xf32, #tpu.memory_space<vmem>>, vector<15x128xf32>
    %c17_74 = arith.constant 17 : index
    %c0_75 = arith.constant 0 : index
    %96 = vector.load %arg9[%c17_74, %c0_75] : memref<32x384xf32, #tpu.memory_space<vmem>>, vector<15x128xf32>
    tpu.vector_store %arg9[%c17_74, %c0_75], %95 {strides = array<i32>} : memref<32x384xf32, #tpu.memory_space<vmem>>, vector<15x128xf32>,
    %c17_76 = arith.constant 17 : index
    %c128_77 = arith.constant 128 : index
    %97 = vector.load %arg9[%c17_76, %c128_77] : memref<32x384xf32, #tpu.memory_space<vmem>>, vector<15x128xf32>
    %c16_78 = arith.constant 16 : index
    %c256_79 = arith.constant 256 : index
    %98 = vector.load %arg9[%c16_78, %c256_79] : memref<32x384xf32, #tpu.memory_space<vmem>>, vector<15x128xf32>
    tpu.vector_store %arg9[%c16_78, %c256_79], %97 {strides = array<i32>} : memref<32x384xf32, #tpu.memory_space<vmem>>, vector<15x128xf32>,
    %c30_80 = arith.constant 30 : index
    %c128_81 = arith.constant 128 : index
    %99 = vector.load %arg9[%c30_80, %c128_81] : memref<32x384xf32, #tpu.memory_space<vmem>>, vector<1x128xf32>
    %c31_82 = arith.constant 31 : index
    %c256_83 = arith.constant 256 : index
    %100 = vector.load %arg9[%c31_82, %c256_83] : memref<32x384xf32, #tpu.memory_space<vmem>>, vector<1x128xf32>
    tpu.vector_store %arg9[%c31_82, %c256_83], %99 {strides = array<i32>} : memref<32x384xf32, #tpu.memory_space<vmem>>, vector<1x128xf32>,
    %c0_84 = arith.constant 0 : index
    %c0_85 = arith.constant 0 : index
    %101 = vector.load %arg9[%c0_84, %c0_85] : memref<32x384xf32, #tpu.memory_space<vmem>>, vector<32x384xf32>
    %c0_86 = arith.constant 0 : index
    %c0_87 = arith.constant 0 : index
    %102 = vector.load %arg3[%c0_86, %c0_87] : memref<384x128xf32, #tpu.memory_space<vmem>>, vector<384x128xf32>
    %cst_88 = arith.constant dense<0.000000e+00> : vector<32x128xf32>
    %103 = tpu.matmul %101, %102, %cst_88 {dimension_numbers = #tpu.dot_dimension_numbers<[1], [0], [0], [1], [0, 0, 1, 1], [], []>} : vector<32x384xf32>, vector<384x128xf32>, vector<32x128xf32> -> vector<32x128xf32>
    %cst_89 = arith.constant dense<0.000000e+00> : vector<128xf32>
    %104 = vector.multi_reduction <add>, %103, %cst_89 [0] : vector<32x128xf32> to vector<128xf32>
    %105 = vector.shape_cast %104 : vector<128xf32> to vector<1x128xf32>
    %106 = arith.mulf %103, %103 : vector<32x128xf32>
    %cst_90 = arith.constant dense<0.000000e+00> : vector<128xf32>
    %107 = vector.multi_reduction <add>, %106, %cst_90 [0] : vector<32x128xf32> to vector<128xf32>
    %108 = vector.shape_cast %107 : vector<128xf32> to vector<1x128xf32>
    %109 = tpu.concatenate %105, %108 in 0 : vector<1x128xf32>, vector<1x128xf32> -> vector<2x128xf32>
    %cst_91 = arith.constant dense<0.000000e+00> : vector<2x128xf32>
    %110 = tpu.matmul %109, %37, %cst_91 {dimension_numbers = #tpu.dot_dimension_numbers<[1], [0], [0], [1], [0, 0, 1, 1], [], []>} : vector<2x128xf32>, vector<128x128xf32>, vector<2x128xf32> -> vector<2x128xf32>
    %111 = vector.extract_strided_slice %110 {offsets = [0, 0], sizes = [1, 128], strides = [1, 1]} : vector<2x128xf32> to vector<1x128xf32>
    %112 = vector.extract_strided_slice %110 {offsets = [1, 0], sizes = [1, 128], strides = [1, 1]} : vector<2x128xf32> to vector<1x128xf32>
    %113 = arith.mulf %111, %111 : vector<1x128xf32>
    %114 = arith.subf %112, %113 : vector<1x128xf32>
    %c0_92 = arith.constant 0 : index
    %c0_93 = arith.constant 0 : index
    %115 = vector.load %arg6[%c0_92, %c0_93] : memref<1x128xf32, #tpu.memory_space<vmem>>, vector<1x128xf32>
    %cst_94 = arith.constant 9.99999974E-6 : f32
    %116 = vector.broadcast %cst_94 : f32 to vector<1x128xf32>
    %117 = arith.addf %114, %116 : vector<1x128xf32>
    %118 = math.rsqrt %117 : vector<1x128xf32>
    %119 = arith.mulf %115, %118 : vector<1x128xf32>
    %c0_95 = arith.constant 0 : index
    %c0_96 = arith.constant 0 : index
    %120 = vector.load %arg7[%c0_95, %c0_96] : memref<1x128xf32, #tpu.memory_space<vmem>>, vector<1x128xf32>
    %121 = arith.mulf %111, %119 : vector<1x128xf32>
    %122 = arith.subf %120, %121 : vector<1x128xf32>
    %123 = vector.broadcast %119 : vector<1x128xf32> to vector<32x128xf32>
    %124 = arith.mulf %103, %123 : vector<32x128xf32>
    %125 = vector.broadcast %122 : vector<1x128xf32> to vector<32x128xf32>
    %126 = arith.addf %124, %125 : vector<32x128xf32>
    %127 = arith.addf %126, %38 : vector<32x128xf32>
    %cst_97 = arith.constant 0.000000e+00 : f32
    %128 = vector.broadcast %cst_97 : f32 to vector<32x128xf32>
    %129 = arith.maximumf %127, %128 : vector<32x128xf32>
    %c0_98 = arith.constant 0 : index
    %c0_99 = arith.constant 0 : index
    %130 = vector.load %arg8[%c0_98, %c0_99] : memref<32x128xf32, #tpu.memory_space<vmem>>, vector<32x128xf32>
    tpu.vector_store %arg8[%c0_98, %c0_99], %129 {strides = array<i32>} : memref<32x128xf32, #tpu.memory_space<vmem>>, vector<32x128xf32>,
    return
  }
  func.func @transform_0(%arg0: i32) -> (i32, i32) {
    %c0_i32 = arith.constant 0 : i32
    %c0_i32_0 = arith.constant 0 : i32
    %c0_i32_1 = arith.constant 0 : i32
    return %c0_i32, %c0_i32_0 : i32, i32
  }
  func.func @transform_1(%arg0: i32) -> (i32, i32) {
    %c0_i32 = arith.constant 0 : i32
    %c0_i32_0 = arith.constant 0 : i32
    %c0_i32_1 = arith.constant 0 : i32
    return %c0_i32, %c0_i32_0 : i32, i32
  }
  func.func @transform_2(%arg0: i32) -> (i32, i32) {
    %c0_i32 = arith.constant 0 : i32
    %c0_i32_0 = arith.constant 0 : i32
    %c0_i32_1 = arith.constant 0 : i32
    return %c0_i32, %c0_i32_0 : i32, i32
  }
  func.func @transform_3(%arg0: i32) -> (i32, i32) {
    %c0_i32 = arith.constant 0 : i32
    %c0_i32_0 = arith.constant 0 : i32
    %c0_i32_1 = arith.constant 0 : i32
    return %c0_i32, %c0_i32_0 : i32, i32
  }
  func.func @transform_4(%arg0: i32) -> (i32, i32) {
    %c0_i32 = arith.constant 0 : i32
    %c0_i32_0 = arith.constant 0 : i32
    %c0_i32_1 = arith.constant 0 : i32
    return %c0_i32, %c0_i32_0 : i32, i32
  }
  func.func @transform_5(%arg0: i32) -> (i32, i32) {
    %c0_i32 = arith.constant 0 : i32
    %c0_i32_0 = arith.constant 0 : i32
    %c0_i32_1 = arith.constant 0 : i32
    return %c0_i32, %c0_i32_0 : i32, i32
  }
  func.func @transform_6(%arg0: i32) -> (i32, i32) {
    %c0_i32 = arith.constant 0 : i32
    %c0_i32_0 = arith.constant 0 : i32
    %c0_i32_1 = arith.constant 0 : i32
    return %c0_i32, %c0_i32_0 : i32, i32
  }
  func.func @transform_7(%arg0: i32) -> (i32, i32) {
    %c0_i32 = arith.constant 0 : i32
    %c0_i32_0 = arith.constant 0 : i32
    %c0_i32_1 = arith.constant 0 : i32
    return %c0_i32, %c0_i32_0 : i32, i32
  }
}

</mosaic_0001>

<llo_original>
// kernel: basic_block_forward.1
$region0: #{basic_block_forward.1}
  #allocation0 [shape = 'u32[]', space=smem, size = 0x4, offset = 0x4, fixed_abs, tag = 'smem constant byte address 0x4 - core index']
  #allocation1 [shape = 'u32[144,128]{1,0:T(1,128)}', space=vmem, size = 0x12000, scoped, tag = 'internal scratch']
  #allocation2 [shape = 'f32[32,384]{1,0:T(8,128)}', space=vmem, size = 0xc000, scoped, tag = 'scratch operand']
  %s0 = inlined_call_operand.vmem [shape: f32[32,128], index: 0, kind: input, shape index: {}]
  %s1 = inlined_call_operand.vmem [shape: f32[384,128], index: 1, kind: input, shape index: {}]
  %s2 = inlined_call_operand.vmem [shape: f32[384,128], index: 2, kind: input, shape index: {}]
  %s3 = inlined_call_operand.vmem [shape: f32[1,128], index: 3, kind: input, shape index: {}]
  %s4 = inlined_call_operand.vmem [shape: f32[1,128], index: 4, kind: input, shape index: {}]
  %s5 = inlined_call_operand.vmem [shape: f32[1,128], index: 5, kind: input, shape index: {}]
  %s6 = inlined_call_operand.vmem [shape: f32[1,128], index: 6, kind: input, shape index: {}]
  %s7 = inlined_call_operand.vmem [shape: f32[32,128], index: 7, kind: output, shape index: {}]
  %s8 = sld [smem:[#allocation0]]
  $region38: #{basic_block_forward.1} parent=0
    _
  %s10 = ssub.s32 1, %s8
  %s11 = scalar_select 0, %s10, %s8
  // Predicated region
  $region2: #{basic_block_forward.1} parent=0 // pred_check
    _
  $region3: #{basic_block_forward.1} parent=0 // pred_check_branch
    %13 = sbr.rel (0) target = $region5
  $region4: #{basic_block_forward.1} parent=0 // pred_region
    _
  $region5: #{basic_block_forward.1} parent=0 // pred_fallthru
    _
  // Predicated region
  $region6: #{basic_block_forward.1} parent=0 // pred_check
    _
  $region7: #{basic_block_forward.1} parent=0 // pred_check_branch
    %15 = sbr.rel (0) target = $region9
  $region8: #{basic_block_forward.1} parent=0 // pred_region
    _
  $region9: #{basic_block_forward.1} parent=0 // pred_fallthru
    _
  // Predicated region
  $region10: #{basic_block_forward.1} parent=0 // pred_check
    _
  $region11: #{basic_block_forward.1} parent=0 // pred_check_branch
    %17 = sbr.rel (0) target = $region13
  $region12: #{basic_block_forward.1} parent=0 // pred_region
    _
  $region13: #{basic_block_forward.1} parent=0 // pred_fallthru
    _
  // Predicated region
  $region14: #{basic_block_forward.1} parent=0 // pred_check
    _
  $region15: #{basic_block_forward.1} parent=0 // pred_check_branch
    %19 = sbr.rel (0) target = $region17
  $region16: #{basic_block_forward.1} parent=0 // pred_region
    _
  $region17: #{basic_block_forward.1} parent=0 // pred_fallthru
    _
  // Predicated region
  $region18: #{basic_block_forward.1} parent=0 // pred_check
    _
  $region19: #{basic_block_forward.1} parent=0 // pred_check_branch
    %21 = sbr.rel (0) target = $region21
  $region20: #{basic_block_forward.1} parent=0 // pred_region
    _
  $region21: #{basic_block_forward.1} parent=0 // pred_fallthru
    _
  // Predicated region
  $region22: #{basic_block_forward.1} parent=0 // pred_check
    _
  $region23: #{basic_block_forward.1} parent=0 // pred_check_branch
    %23 = sbr.rel (0) target = $region25
  $region24: #{basic_block_forward.1} parent=0 // pred_region
    _
  $region25: #{basic_block_forward.1} parent=0 // pred_fallthru
    _
  // Predicated region
  $region26: #{basic_block_forward.1} parent=0 // pred_check
    _
  $region27: #{basic_block_forward.1} parent=0 // pred_check_branch
    %25 = sbr.rel (0) target = $region29
  $region28: #{basic_block_forward.1} parent=0 // pred_region
    _
  $region29: #{basic_block_forward.1} parent=0 // pred_fallthru
    _
  %v26 = vlaneseq
  %v27 = vshrl.u32 %v26, 7
  %v28 = vadd.s32 %v27, 8
  %v29 = vadd.s32 %v27, 16
  %v30 = vadd.s32 %v27, 24
  %v31 = vadd.s32 %v27, 32
  %v32 = vadd.s32 %v27, 40
  %v33 = vadd.s32 %v27, 48
  %v34 = vadd.s32 %v27, 56
  %v35 = vadd.s32 %v27, 64
  %v36 = vadd.s32 %v27, 72
  %v37 = vadd.s32 %v27, 80
  %v38 = vadd.s32 %v27, 88
  %v39 = vadd.s32 %v27, 96
  %v40 = vadd.s32 %v27, 104
  %v41 = vadd.s32 %v27, 112
  %v42 = vadd.s32 %v27, 120
  %vm43 = vcmp.lt.s32.totalorder %v27, 0
  %v44 = vsub.s32 0, %v27
  %v45 = vsel %vm43, %v44, %v27
  %v46 = vshrl.u32 %v45, 3
  %v47 = vand.u32 %v45, 7
  %v48 = vsub.s32 0, %v47
  %v49 = vsel %vm43, %v48, %v47
  %vm50 = vcmp.lt.s32.totalorder %v28, 0
  %v51 = vsub.s32 0, %v28
  %v52 = vsel %vm50, %v51, %v28
  %v53 = vshrl.u32 %v52, 3
  %v54 = vand.u32 %v52, 7
  %v55 = vsub.s32 0, %v54
  %v56 = vsel %vm50, %v55, %v54
  %vm57 = vcmp.lt.s32.totalorder %v29, 0
  %v58 = vsub.s32 0, %v29
  %v59 = vsel %vm57, %v58, %v29
  %v60 = vshrl.u32 %v59, 3
  %v61 = vand.u32 %v59, 7
  %v62 = vsub.s32 0, %v61
  %v63 = vsel %vm57, %v62, %v61
  %vm64 = vcmp.lt.s32.totalorder %v30, 0
  %v65 = vsub.s32 0, %v30
  %v66 = vsel %vm64, %v65, %v30
  %v67 = vshrl.u32 %v66, 3
  %v68 = vand.u32 %v66, 7
  %v69 = vsub.s32 0, %v68
  %v70 = vsel %vm64, %v69, %v68
  %vm71 = vcmp.lt.s32.totalorder %v31, 0
  %v72 = vsub.s32 0, %v31
  %v73 = vsel %vm71, %v72, %v31
  %v74 = vshrl.u32 %v73, 3
  %v75 = vand.u32 %v73, 7
  %v76 = vsub.s32 0, %v75
  %v77 = vsel %vm71, %v76, %v75
  %vm78 = vcmp.lt.s32.totalorder %v32, 0
  %v79 = vsub.s32 0, %v32
  %v80 = vsel %vm78, %v79, %v32
  %v81 = vshrl.u32 %v80, 3
  %v82 = vand.u32 %v80, 7
  %v83 = vsub.s32 0, %v82
  %v84 = vsel %vm78, %v83, %v82
  %vm85 = vcmp.lt.s32.totalorder %v33, 0
  %v86 = vsub.s32 0, %v33
  %v87 = vsel %vm85, %v86, %v33
  %v88 = vshrl.u32 %v87, 3
  %v89 = vand.u32 %v87, 7
  %v90 = vsub.s32 0, %v89
  %v91 = vsel %vm85, %v90, %v89
  %vm92 = vcmp.lt.s32.totalorder %v34, 0
  %v93 = vsub.s32 0, %v34
  %v94 = vsel %vm92, %v93, %v34
  %v95 = vshrl.u32 %v94, 3
  %v96 = vand.u32 %v94, 7
  %v97 = vsub.s32 0, %v96
  %v98 = vsel %vm92, %v97, %v96
  %vm99 = vcmp.lt.s32.totalorder %v35, 0
  %v100 = vsub.s32 0, %v35
  %v101 = vsel %vm99, %v100, %v35
  %v102 = vshrl.u32 %v101, 3
  %v103 = vand.u32 %v101, 7
  %v104 = vsub.s32 0, %v103
  %v105 = vsel %vm99, %v104, %v103
  %vm106 = vcmp.lt.s32.totalorder %v36, 0
  %v107 = vsub.s32 0, %v36
  %v108 = vsel %vm106, %v107, %v36
  %v109 = vshrl.u32 %v108, 3
  %v110 = vand.u32 %v108, 7
  %v111 = vsub.s32 0, %v110
  %v112 = vsel %vm106, %v111, %v110
  %vm113 = vcmp.lt.s32.totalorder %v37, 0
  %v114 = vsub.s32 0, %v37
  %v115 = vsel %vm113, %v114, %v37
  %v116 = vshrl.u32 %v115, 3
  %v117 = vand.u32 %v115, 7
  %v118 = vsub.s32 0, %v117
  %v119 = vsel %vm113, %v118, %v117
  %vm120 = vcmp.lt.s32.totalorder %v38, 0
  %v121 = vsub.s32 0, %v38
  %v122 = vsel %vm120, %v121, %v38
  %v123 = vshrl.u32 %v122, 3
  %v124 = vand.u32 %v122, 7
  %v125 = vsub.s32 0, %v124
  %v126 = vsel %vm120, %v125, %v124
  %vm127 = vcmp.lt.s32.totalorder %v39, 0
  %v128 = vsub.s32 0, %v39
  %v129 = vsel %vm127, %v128, %v39
  %v130 = vshrl.u32 %v129, 3
  %v131 = vand.u32 %v129, 7
  %v132 = vsub.s32 0, %v131
  %v133 = vsel %vm127, %v132, %v131
  %vm134 = vcmp.lt.s32.totalorder %v40, 0
  %v135 = vsub.s32 0, %v40
  %v136 = vsel %vm134, %v135, %v40
  %v137 = vshrl.u32 %v136, 3
  %v138 = vand.u32 %v136, 7
  %v139 = vsub.s32 0, %v138
  %v140 = vsel %vm134, %v139, %v138
  %vm141 = vcmp.lt.s32.totalorder %v41, 0
  %v142 = vsub.s32 0, %v41
  %v143 = vsel %vm141, %v142, %v41
  %v144 = vshrl.u32 %v143, 3
  %v145 = vand.u32 %v143, 7
  %v146 = vsub.s32 0, %v145
  %v147 = vsel %vm141, %v146, %v145
  %vm148 = vcmp.lt.s32.totalorder %v42, 0
  %v149 = vsub.s32 0, %v42
  %v150 = vsel %vm148, %v149, %v42
  %v151 = vshrl.u32 %v150, 3
  %v152 = vand.u32 %v150, 7
  %v153 = vsub.s32 0, %v152
  %v154 = vsel %vm148, %v153, %v152
  %vm155 = vcmp.ne.s32.totalorder %v49, 0
  %vm156 = vcmp.ne.s32.totalorder %v56, 0
  %vm157 = vcmp.ne.s32.totalorder %v63, 0
  %vm158 = vcmp.ne.s32.totalorder %v70, 0
  %vm159 = vcmp.ne.s32.totalorder %v77, 0
  %vm160 = vcmp.ne.s32.totalorder %v84, 0
  %vm161 = vcmp.ne.s32.totalorder %v91, 0
  %vm162 = vcmp.ne.s32.totalorder %v98, 0
  %vm163 = vcmp.ne.s32.totalorder %v105, 0
  %vm164 = vcmp.ne.s32.totalorder %v112, 0
  %vm165 = vcmp.ne.s32.totalorder %v119, 0
  %vm166 = vcmp.ne.s32.totalorder %v126, 0
  %vm167 = vcmp.ne.s32.totalorder %v133, 0
  %vm168 = vcmp.ne.s32.totalorder %v140, 0
  %vm169 = vcmp.ne.s32.totalorder %v147, 0
  %vm170 = vcmp.ne.s32.totalorder %v154, 0
  %vm171 = vcmp.lt.s32.totalorder %v49, 0
  %vm172 = vcmp.lt.s32.totalorder %v56, 0
  %vm173 = vcmp.lt.s32.totalorder %v63, 0
  %vm174 = vcmp.lt.s32.totalorder %v70, 0
  %vm175 = vcmp.lt.s32.totalorder %v77, 0
  %vm176 = vcmp.lt.s32.totalorder %v84, 0
  %vm177 = vcmp.lt.s32.totalorder %v91, 0
  %vm178 = vcmp.lt.s32.totalorder %v98, 0
  %vm179 = vcmp.lt.s32.totalorder %v105, 0
  %vm180 = vcmp.lt.s32.totalorder %v112, 0
  %vm181 = vcmp.lt.s32.totalorder %v119, 0
  %vm182 = vcmp.lt.s32.totalorder %v126, 0
  %vm183 = vcmp.lt.s32.totalorder %v133, 0
  %vm184 = vcmp.lt.s32.totalorder %v140, 0
  %vm185 = vcmp.lt.s32.totalorder %v147, 0
  %vm186 = vcmp.lt.s32.totalorder %v154, 0
  %vm187 = vmand %vm171, %vm155
  %vm188 = vmand %vm172, %vm156
  %vm189 = vmand %vm173, %vm157
  %vm190 = vmand %vm174, %vm158
  %vm191 = vmand %vm175, %vm159
  %vm192 = vmand %vm176, %vm160
  %vm193 = vmand %vm177, %vm161
  %vm194 = vmand %vm178, %vm162
  %vm195 = vmand %vm179, %vm163
  %vm196 = vmand %vm180, %vm164
  %vm197 = vmand %vm181, %vm165
  %vm198 = vmand %vm182, %vm166
  %vm199 = vmand %vm183, %vm167
  %vm200 = vmand %vm184, %vm168
  %vm201 = vmand %vm185, %vm169
  %vm202 = vmand %vm186, %vm170
  %v203 = vadd.s32 %v49, 8
  %v204 = vadd.s32 %v56, 8
  %v205 = vadd.s32 %v63, 8
  %v206 = vadd.s32 %v70, 8
  %v207 = vadd.s32 %v77, 8
  %v208 = vadd.s32 %v84, 8
  %v209 = vadd.s32 %v91, 8
  %v210 = vadd.s32 %v98, 8
  %v211 = vadd.s32 %v105, 8
  %v212 = vadd.s32 %v112, 8
  %v213 = vadd.s32 %v119, 8
  %v214 = vadd.s32 %v126, 8
  %v215 = vadd.s32 %v133, 8
  %v216 = vadd.s32 %v140, 8
  %v217 = vadd.s32 %v147, 8
  %v218 = vadd.s32 %v154, 8
  %v219 = vsel %vm187, %v203, %v49
  %v220 = vsel %vm188, %v204, %v56
  %v221 = vsel %vm189, %v205, %v63
  %v222 = vsel %vm190, %v206, %v70
  %v223 = vsel %vm191, %v207, %v77
  %v224 = vsel %vm192, %v208, %v84
  %v225 = vsel %vm193, %v209, %v91
  %v226 = vsel %vm194, %v210, %v98
  %v227 = vsel %vm195, %v211, %v105
  %v228 = vsel %vm196, %v212, %v112
  %v229 = vsel %vm197, %v213, %v119
  %v230 = vsel %vm198, %v214, %v126
  %v231 = vsel %vm199, %v215, %v133
  %v232 = vsel %vm200, %v216, %v140
  %v233 = vsel %vm201, %v217, %v147
  %v234 = vsel %vm202, %v218, %v154
  %v235 = vlaneseq
  %v236 = vand.u32 %v235, 127
  %vm237 = vcmp.lt.s32.totalorder %v236, 0
  %v238 = vsub.s32 0, %v236
  %v239 = vsel %vm237, %v238, %v236
  %v240 = vshrl.u32 %v239, 3
  %v241 = vand.u32 %v239, 7
  %v242 = vsub.s32 0, %v241
  %v243 = vsel %vm237, %v242, %v241
  %vm244 = vcmp.ne.s32.totalorder %v243, 0
  %vm245 = vcmp.lt.s32.totalorder %v243, 0
  %vm246 = vmand %vm245, %vm244
  %v247 = vadd.s32 %v243, 8
  %v248 = vsel %vm246, %v247, %v243
  %vm249 = vcmp.eq.s32.totalorder %v219, %v248
  %vm250 = vcmp.eq.s32.totalorder %v220, %v248
  %vm251 = vcmp.eq.s32.totalorder %v221, %v248
  %vm252 = vcmp.eq.s32.totalorder %v222, %v248
  %vm253 = vcmp.eq.s32.totalorder %v223, %v248
  %vm254 = vcmp.eq.s32.totalorder %v224, %v248
  %vm255 = vcmp.eq.s32.totalorder %v225, %v248
  %vm256 = vcmp.eq.s32.totalorder %v226, %v248
  %vm257 = vcmp.eq.s32.totalorder %v227, %v248
  %vm258 = vcmp.eq.s32.totalorder %v228, %v248
  %vm259 = vcmp.eq.s32.totalorder %v229, %v248
  %vm260 = vcmp.eq.s32.totalorder %v230, %v248
  %vm261 = vcmp.eq.s32.totalorder %v231, %v248
  %vm262 = vcmp.eq.s32.totalorder %v232, %v248
  %vm263 = vcmp.eq.s32.totalorder %v233, %v248
  %vm264 = vcmp.eq.s32.totalorder %v234, %v248
  %v265 = vsel %vm249, 0.001953125, 0.0
  %v266 = vsel %vm250, 0.001953125, 0.0
  %v267 = vsel %vm251, 0.001953125, 0.0
  %v268 = vsel %vm252, 0.001953125, 0.0
  %v269 = vsel %vm253, 0.001953125, 0.0
  %v270 = vsel %vm254, 0.001953125, 0.0
  %v271 = vsel %vm255, 0.001953125, 0.0
  %v272 = vsel %vm256, 0.001953125, 0.0
  %v273 = vsel %vm257, 0.001953125, 0.0
  %v274 = vsel %vm258, 0.001953125, 0.0
  %v275 = vsel %vm259, 0.001953125, 0.0
  %v276 = vsel %vm260, 0.001953125, 0.0
  %v277 = vsel %vm261, 0.001953125, 0.0
  %v278 = vsel %vm262, 0.001953125, 0.0
  %v279 = vsel %vm263, 0.001953125, 0.0
  %v280 = vsel %vm264, 0.001953125, 0.0
  %v281 = vld [vmem:[%s0] sm:$0xff]
  %v282 = vld [vmem:[%s0 + $0x8] sm:$0xff]
  %v283 = vld [vmem:[%s0 + $0x10] sm:$0xff]
  %v284 = vld [vmem:[%s0 + $0x18] sm:$0xff]
  %285 = vst [vmem:[#allocation2 + $0x8] sm:$0xff] %v281
  %286 = vst [vmem:[#allocation2 + $0x20] sm:$0xff] %v282
  %287 = vst [vmem:[#allocation2 + $0x38] sm:$0xff] %v283
  %288 = vst [vmem:[#allocation2 + $0x50] sm:$0xff] %v284
  %v289 = vld [vmem:[%s0 + $0x1] sm:$0x1]
  %290 = vst [vmem:[#allocation2] sm:$0x1] %v289
  %v291 = vld [vmem:[%s0] sm:$0xff]
  %v292 = vld [vmem:[%s0 + $0x8] sm:$0x7f]
  %vm295 = vcmask 1040384
  %v296 = vrot.slane %v291, 7
  %v297 = vrot.slane %v292, 7
  %v298 = vsel %vm295, %v296, %v297
  %301 = vst [vmem:[#allocation2] sm:$0xfe] %v296
  %302 = vst [vmem:[#allocation2 + $0x18] sm:$0xff] %v298
  %v303 = vld [vmem:[%s0 + $0x1] sm:$0xff]
  %v304 = vld [vmem:[%s0 + $0x9] sm:$0x7f]
  %305 = vst [vmem:[#allocation2 + $0x10] sm:$0xff] %v303
  %306 = vst [vmem:[#allocation2 + $0x28] sm:$0x7f] %v304
  %v307 = vld [vmem:[%s0 + $0xe] sm:$0x1]
  %308 = vst [vmem:[#allocation2 + $0x2f] sm:$0x1] %v307
  %v309 = vld [vmem:[%s0 + $0x11] sm:$0x1]
  %310 = vst [vmem:[#allocation2 + $0x30] sm:$0x1] %v309
  %v311 = vld [vmem:[%s0 + $0x10] sm:$0xff]
  %v312 = vld [vmem:[%s0 + $0x18] sm:$0x7f]
  %v315 = vrot.slane %v311, 7
  %v316 = vrot.slane %v312, 7
  %v317 = vsel %vm295, %v315, %v316
  %320 = vst [vmem:[#allocation2 + $0x30] sm:$0xfe] %v315
  %321 = vst [vmem:[#allocation2 + $0x48] sm:$0xff] %v317
  %v322 = vld [vmem:[%s0 + $0x11] sm:$0xff]
  %v323 = vld [vmem:[%s0 + $0x19] sm:$0x7f]
  %324 = vst [vmem:[#allocation2 + $0x40] sm:$0xff] %v322
  %325 = vst [vmem:[#allocation2 + $0x58] sm:$0x7f] %v323
  %v326 = vld [vmem:[%s0 + $0x1e] sm:$0x1]
  %327 = vst [vmem:[#allocation2 + $0x5f] sm:$0x1] %v326
  %v328 = vld [vmem:[#allocation2] sm:$0xff]
  %v329 = vld [vmem:[#allocation2 + $0x8] sm:$0xff]
  %v330 = vld [vmem:[#allocation2 + $0x10] sm:$0xff]
  %v331 = vld [vmem:[#allocation2 + $0x18] sm:$0xff]
  %v332 = vld [vmem:[#allocation2 + $0x20] sm:$0xff]
  %v333 = vld [vmem:[#allocation2 + $0x28] sm:$0xff]
  %v334 = vld [vmem:[#allocation2 + $0x30] sm:$0xff]
  %v335 = vld [vmem:[#allocation2 + $0x38] sm:$0xff]
  %v336 = vld [vmem:[#allocation2 + $0x40] sm:$0xff]
  %v337 = vld [vmem:[#allocation2 + $0x48] sm:$0xff]
  %v338 = vld [vmem:[#allocation2 + $0x50] sm:$0xff]
  %v339 = vld [vmem:[#allocation2 + $0x58] sm:$0xff]
  %v340 = vld [vmem:[%s1] sm:$0xff]
  %v341 = vld [vmem:[%s1 + $0x8] sm:$0xff]
  %v342 = vld [vmem:[%s1 + $0x10] sm:$0xff]
  %v343 = vld [vmem:[%s1 + $0x18] sm:$0xff]
  %v344 = vld [vmem:[%s1 + $0x20] sm:$0xff]
  %v345 = vld [vmem:[%s1 + $0x28] sm:$0xff]
  %v346 = vld [vmem:[%s1 + $0x30] sm:$0xff]
  %v347 = vld [vmem:[%s1 + $0x38] sm:$0xff]
  %v348 = vld [vmem:[%s1 + $0x40] sm:$0xff]
  %v349 = vld [vmem:[%s1 + $0x48] sm:$0xff]
  %v350 = vld [vmem:[%s1 + $0x50] sm:$0xff]
  %v351 = vld [vmem:[%s1 + $0x58] sm:$0xff]
  %v352 = vld [vmem:[%s1 + $0x60] sm:$0xff]
  %v353 = vld [vmem:[%s1 + $0x68] sm:$0xff]
  %v354 = vld [vmem:[%s1 + $0x70] sm:$0xff]
  %v355 = vld [vmem:[%s1 + $0x78] sm:$0xff]
  %v356 = vld [vmem:[%s1 + $0x80] sm:$0xff]
  %v357 = vld [vmem:[%s1 + $0x88] sm:$0xff]
  %v358 = vld [vmem:[%s1 + $0x90] sm:$0xff]
  %v359 = vld [vmem:[%s1 + $0x98] sm:$0xff]
  %v360 = vld [vmem:[%s1 + $0xa0] sm:$0xff]
  %v361 = vld [vmem:[%s1 + $0xa8] sm:$0xff]
  %v362 = vld [vmem:[%s1 + $0xb0] sm:$0xff]
  %v363 = vld [vmem:[%s1 + $0xb8] sm:$0xff]
  %v364 = vld [vmem:[%s1 + $0xc0] sm:$0xff]
  %v365 = vld [vmem:[%s1 + $0xc8] sm:$0xff]
  %v366 = vld [vmem:[%s1 + $0xd0] sm:$0xff]
  %v367 = vld [vmem:[%s1 + $0xd8] sm:$0xff]
  %v368 = vld [vmem:[%s1 + $0xe0] sm:$0xff]
  %v369 = vld [vmem:[%s1 + $0xe8] sm:$0xff]
  %v370 = vld [vmem:[%s1 + $0xf0] sm:$0xff]
  %v371 = vld [vmem:[%s1 + $0xf8] sm:$0xff]
  %v372 = vld [vmem:[%s1 + $0x100] sm:$0xff]
  %v373 = vld [vmem:[%s1 + $0x108] sm:$0xff]
  %v374 = vld [vmem:[%s1 + $0x110] sm:$0xff]
  %v375 = vld [vmem:[%s1 + $0x118] sm:$0xff]
  %v376 = vld [vmem:[%s1 + $0x120] sm:$0xff]
  %v377 = vld [vmem:[%s1 + $0x128] sm:$0xff]
  %v378 = vld [vmem:[%s1 + $0x130] sm:$0xff]
  %v379 = vld [vmem:[%s1 + $0x138] sm:$0xff]
  %v380 = vld [vmem:[%s1 + $0x140] sm:$0xff]
  %v381 = vld [vmem:[%s1 + $0x148] sm:$0xff]
  %v382 = vld [vmem:[%s1 + $0x150] sm:$0xff]
  %v383 = vld [vmem:[%s1 + $0x158] sm:$0xff]
  %v384 = vld [vmem:[%s1 + $0x160] sm:$0xff]
  %v385 = vld [vmem:[%s1 + $0x168] sm:$0xff]
  %v386 = vld [vmem:[%s1 + $0x170] sm:$0xff]
  %v387 = vld [vmem:[%s1 + $0x178] sm:$0xff]
  %388 = vmatprep.subr.mxu0 0.0
  %389 = vmatpush1.msra.mxu0 %v355
  %390 = vmatprep.subr.mxu0 0.0
  %391 = vmatpush1.msra.mxu0 %v354
  %392 = vmatprep.subr.mxu0 0.0
  %393 = vmatpush1.msra.mxu0 %v353
  %394 = vmatprep.subr.mxu0 0.0
  %395 = vmatpush1.msra.mxu0 %v352
  %396 = vmatprep.subr.mxu0 0.0
  %397 = vmatpush1.msra.mxu0 %v351
  %398 = vmatprep.subr.mxu0 0.0
  %399 = vmatpush1.msra.mxu0 %v350
  %400 = vmatprep.subr.mxu0 0.0
  %401 = vmatpush1.msra.mxu0 %v349
  %402 = vmatprep.subr.mxu0 0.0
  %403 = vmatpush1.msra.mxu0 %v348
  %404 = vmatprep.subr.mxu0 0.0
  %405 = vmatpush1.msra.mxu0 %v347
  %406 = vmatprep.subr.mxu0 0.0
  %407 = vmatpush1.msra.mxu0 %v346
  %408 = vmatprep.subr.mxu0 0.0
  %409 = vmatpush1.msra.mxu0 %v345
  %410 = vmatprep.subr.mxu0 0.0
  %411 = vmatpush1.msra.mxu0 %v344
  %412 = vmatprep.subr.mxu0 0.0
  %413 = vmatpush1.msra.mxu0 %v343
  %414 = vmatprep.subr.mxu0 0.0
  %415 = vmatpush1.msra.mxu0 %v342
  %416 = vmatprep.subr.mxu0 0.0
  %417 = vmatpush1.msra.mxu0 %v341
  %418 = vmatprep.subr.mxu0 0.0
  %419 = vmatpush1.msra.mxu0 %v340
  %420 = vmatprep.subr.mxu0 0.0
  %421 = vmatpush2.msra.mxu0 %v371
  %422 = vmatprep.subr.mxu0 0.0
  %423 = vmatpush2.msra.mxu0 %v370
  %424 = vmatprep.subr.mxu0 0.0
  %425 = vmatpush2.msra.mxu0 %v369
  %426 = vmatprep.subr.mxu0 0.0
  %427 = vmatpush2.msra.mxu0 %v368
  %428 = vmatprep.subr.mxu0 0.0
  %429 = vmatpush2.msra.mxu0 %v367
  %430 = vmatprep.subr.mxu0 0.0
  %431 = vmatpush2.msra.mxu0 %v366
  %432 = vmatprep.subr.mxu0 0.0
  %433 = vmatpush2.msra.mxu0 %v365
  %434 = vmatprep.subr.mxu0 0.0
  %435 = vmatpush2.msra.mxu0 %v364
  %436 = vmatprep.subr.mxu0 0.0
  %437 = vmatpush2.msra.mxu0 %v363
  %438 = vmatprep.subr.mxu0 0.0
  %439 = vmatpush2.msra.mxu0 %v362
  %440 = vmatprep.subr.mxu0 0.0
  %441 = vmatpush2.msra.mxu0 %v361
  %442 = vmatprep.subr.mxu0 0.0
  %443 = vmatpush2.msra.mxu0 %v360
  %444 = vmatprep.subr.mxu0 0.0
  %445 = vmatpush2.msra.mxu0 %v359
  %446 = vmatprep.subr.mxu0 0.0
  %447 = vmatpush2.msra.mxu0 %v358
  %448 = vmatprep.subr.mxu0 0.0
  %449 = vmatpush2.msra.mxu0 %v357
  %450 = vmatprep.subr.mxu0 0.0
  %451 = vmatpush2.msra.mxu0 %v356
  %452 = vmatprep.mubr.f32.mxu0 %v329
  %453 = vmatmul.mubr.f32.gmra.mxu0 %v328
  %v454 = vpop.f32.mrf.mxu0
  %v455 = vadd.f32 0.0, %v454
  %v456 = vpop.f32.mrf.mxu0
  %457 = vmatprep.mubr.f32.mxu0 %v332
  %458 = vmatmul.mubr.f32.gmra.mxu0 %v331
  %v459 = vpop.f32.mrf.mxu0
  %v460 = vadd.f32 0.0, %v459
  %v461 = vpop.f32.mrf.mxu0
  %462 = vmatprep.mubr.f32.mxu0 %v335
  %463 = vmatmul.mubr.f32.gmra.mxu0 %v334
  %v464 = vpop.f32.mrf.mxu0
  %v465 = vadd.f32 0.0, %v464
  %v466 = vpop.f32.mrf.mxu0
  %467 = vmatprep.mubr.f32.mxu0 %v338
  %468 = vmatmul.mubr.f32.gmra.mxu0 %v337
  %v469 = vpop.f32.mrf.mxu0
  %v470 = vadd.f32 0.0, %v469
  %v471 = vpop.f32.mrf.mxu0
  %472 = vdwg.mxu0
  %473 = vmatprep.subr.mxu0 0.0
  %474 = vmatpush1.msra.mxu0 %v387
  %475 = vmatprep.subr.mxu0 0.0
  %476 = vmatpush1.msra.mxu0 %v386
  %477 = vmatprep.subr.mxu0 0.0
  %478 = vmatpush1.msra.mxu0 %v385
  %479 = vmatprep.subr.mxu0 0.0
  %480 = vmatpush1.msra.mxu0 %v384
  %481 = vmatprep.subr.mxu0 0.0
  %482 = vmatpush1.msra.mxu0 %v383
  %483 = vmatprep.subr.mxu0 0.0
  %484 = vmatpush1.msra.mxu0 %v382
  %485 = vmatprep.subr.mxu0 0.0
  %486 = vmatpush1.msra.mxu0 %v381
  %487 = vmatprep.subr.mxu0 0.0
  %488 = vmatpush1.msra.mxu0 %v380
  %489 = vmatprep.subr.mxu0 0.0
  %490 = vmatpush1.msra.mxu0 %v379
  %491 = vmatprep.subr.mxu0 0.0
  %492 = vmatpush1.msra.mxu0 %v378
  %493 = vmatprep.subr.mxu0 0.0
  %494 = vmatpush1.msra.mxu0 %v377
  %495 = vmatprep.subr.mxu0 0.0
  %496 = vmatpush1.msra.mxu0 %v376
  %497 = vmatprep.subr.mxu0 0.0
  %498 = vmatpush1.msra.mxu0 %v375
  %499 = vmatprep.subr.mxu0 0.0
  %500 = vmatpush1.msra.mxu0 %v374
  %501 = vmatprep.subr.mxu0 0.0
  %502 = vmatpush1.msra.mxu0 %v373
  %503 = vmatprep.subr.mxu0 0.0
  %504 = vmatpush1.msra.mxu0 %v372
  %505 = vmatprep.subr.mxu0 0.0
  %506 = vmatpush2.msra.mxu0 0.0
  %507 = vmatprep.subr.mxu0 0.0
  %508 = vmatpush2.msra.mxu0 0.0
  %509 = vmatprep.subr.mxu0 0.0
  %510 = vmatpush2.msra.mxu0 0.0
  %511 = vmatprep.subr.mxu0 0.0
  %512 = vmatpush2.msra.mxu0 0.0
  %513 = vmatprep.subr.mxu0 0.0
  %514 = vmatpush2.msra.mxu0 0.0
  %515 = vmatprep.subr.mxu0 0.0
  %516 = vmatpush2.msra.mxu0 0.0
  %517 = vmatprep.subr.mxu0 0.0
  %518 = vmatpush2.msra.mxu0 0.0
  %519 = vmatprep.subr.mxu0 0.0
  %520 = vmatpush2.msra.mxu0 0.0
  %521 = vmatprep.subr.mxu0 0.0
  %522 = vmatpush2.msra.mxu0 0.0
  %523 = vmatprep.subr.mxu0 0.0
  %524 = vmatpush2.msra.mxu0 0.0
  %525 = vmatprep.subr.mxu0 0.0
  %526 = vmatpush2.msra.mxu0 0.0
  %527 = vmatprep.subr.mxu0 0.0
  %528 = vmatpush2.msra.mxu0 0.0
  %529 = vmatprep.subr.mxu0 0.0
  %530 = vmatpush2.msra.mxu0 0.0
  %531 = vmatprep.subr.mxu0 0.0
  %532 = vmatpush2.msra.mxu0 0.0
  %533 = vmatprep.subr.mxu0 0.0
  %534 = vmatpush2.msra.mxu0 0.0
  %535 = vmatprep.subr.mxu0 0.0
  %536 = vmatpush2.msra.mxu0 0.0
  %537 = vmatprep.mubr.f32.mxu0 0.0
  %538 = vmatmul.mubr.f32.gmra.mxu0 %v330
  %v539 = vpop.f32.mrf.mxu0
  %v540 = vadd.f32 %v455, %v539
  %v541 = vpop.f32.mrf.mxu0
  %542 = vmatprep.mubr.f32.mxu0 0.0
  %543 = vmatmul.mubr.f32.gmra.mxu0 %v333
  %v544 = vpop.f32.mrf.mxu0
  %v545 = vadd.f32 %v460, %v544
  %v546 = vpop.f32.mrf.mxu0
  %547 = vmatprep.mubr.f32.mxu0 0.0
  %548 = vmatmul.mubr.f32.gmra.mxu0 %v336
  %v549 = vpop.f32.mrf.mxu0
  %v550 = vadd.f32 %v465, %v549
  %v551 = vpop.f32.mrf.mxu0
  %552 = vmatprep.mubr.f32.mxu0 0.0
  %553 = vmatmul.mubr.f32.gmra.mxu0 %v339
  %v554 = vpop.f32.mrf.mxu0
  %v555 = vadd.f32 %v470, %v554
  %v556 = vpop.f32.mrf.mxu0
  %557 = vdwg.mxu0
  %v558 = vadd.f32 %v540, %v545
  %v559 = vadd.f32 %v558, %v550
  %v560 = vadd.f32 %v559, %v555
  %v561 = vrot.slane %v560, 4
  %v562 = vadd.f32 %v560, %v561
  %v563 = vrot.slane %v562, 2
  %v564 = vadd.f32 %v562, %v563
  %v565 = vrot.slane %v564, 1
  %v566 = vadd.f32 %v564, %v565
  %v567 = vmul.f32 %v540, %v540
  %v568 = vmul.f32 %v545, %v545
  %v569 = vmul.f32 %v550, %v550
  %v570 = vmul.f32 %v555, %v555
  %v571 = vadd.f32 %v567, %v568
  %v572 = vadd.f32 %v571, %v569
  %v573 = vadd.f32 %v572, %v570
  %v574 = vrot.slane %v573, 4
  %v575 = vadd.f32 %v573, %v574
  %v576 = vrot.slane %v575, 2
  %v577 = vadd.f32 %v575, %v576
  %v578 = vrot.slane %v577, 1
  %v579 = vadd.f32 %v577, %v578
  %v580 = vsel %vm295, %v566, %v579
  %581 = vmatprep.subr.mxu0 0.0
  %582 = vmatpush1.msra.mxu0 %v280
  %583 = vmatprep.subr.mxu0 0.0
  %584 = vmatpush1.msra.mxu0 %v279
  %585 = vmatprep.subr.mxu0 0.0
  %586 = vmatpush1.msra.mxu0 %v278
  %587 = vmatprep.subr.mxu0 0.0
  %588 = vmatpush1.msra.mxu0 %v277
  %589 = vmatprep.subr.mxu0 0.0
  %590 = vmatpush1.msra.mxu0 %v276
  %591 = vmatprep.subr.mxu0 0.0
  %592 = vmatpush1.msra.mxu0 %v275
  %593 = vmatprep.subr.mxu0 0.0
  %594 = vmatpush1.msra.mxu0 %v274
  %595 = vmatprep.subr.mxu0 0.0
  %596 = vmatpush1.msra.mxu0 %v273
  %597 = vmatprep.subr.mxu0 0.0
  %598 = vmatpush1.msra.mxu0 %v272
  %599 = vmatprep.subr.mxu0 0.0
  %600 = vmatpush1.msra.mxu0 %v271
  %601 = vmatprep.subr.mxu0 0.0
  %602 = vmatpush1.msra.mxu0 %v270
  %603 = vmatprep.subr.mxu0 0.0
  %604 = vmatpush1.msra.mxu0 %v269
  %605 = vmatprep.subr.mxu0 0.0
  %606 = vmatpush1.msra.mxu0 %v268
  %607 = vmatprep.subr.mxu0 0.0
  %608 = vmatpush1.msra.mxu0 %v267
  %609 = vmatprep.subr.mxu0 0.0
  %610 = vmatpush1.msra.mxu0 %v266
  %611 = vmatprep.subr.mxu0 0.0
  %612 = vmatpush1.msra.mxu0 %v265
  %613 = vmatprep.subr.mxu0 0.0
  %614 = vmatpush2.msra.mxu0 0.0
  %615 = vmatprep.subr.mxu0 0.0
  %616 = vmatpush2.msra.mxu0 0.0
  %617 = vmatprep.subr.mxu0 0.0
  %618 = vmatpush2.msra.mxu0 0.0
  %619 = vmatprep.subr.mxu0 0.0
  %620 = vmatpush2.msra.mxu0 0.0
  %621 = vmatprep.subr.mxu0 0.0
  %622 = vmatpush2.msra.mxu0 0.0
  %623 = vmatprep.subr.mxu0 0.0
  %624 = vmatpush2.msra.mxu0 0.0
  %625 = vmatprep.subr.mxu0 0.0
  %626 = vmatpush2.msra.mxu0 0.0
  %627 = vmatprep.subr.mxu0 0.0
  %628 = vmatpush2.msra.mxu0 0.0
  %629 = vmatprep.subr.mxu0 0.0
  %630 = vmatpush2.msra.mxu0 0.0
  %631 = vmatprep.subr.mxu0 0.0
  %632 = vmatpush2.msra.mxu0 0.0
  %633 = vmatprep.subr.mxu0 0.0
  %634 = vmatpush2.msra.mxu0 0.0
  %635 = vmatprep.subr.mxu0 0.0
  %636 = vmatpush2.msra.mxu0 0.0
  %637 = vmatprep.subr.mxu0 0.0
  %638 = vmatpush2.msra.mxu0 0.0
  %639 = vmatprep.subr.mxu0 0.0
  %640 = vmatpush2.msra.mxu0 0.0
  %641 = vmatprep.subr.mxu0 0.0
  %642 = vmatpush2.msra.mxu0 0.0
  %643 = vmatprep.subr.mxu0 0.0
  %644 = vmatpush2.msra.mxu0 0.0
  %645 = vmatprep.mubr.f32.mxu0 0.0
  %646 = vmatmul.mubr.f32.gmra.mxu0 %v580
  %v647 = vpop.f32.mrf.mxu0
  %v648 = vadd.f32 0.0, %v647
  %v649 = vpop.f32.mrf.mxu0
  %650 = vdwg.mxu0
  %v651 = vmul.f32 %v648, %v648
  %v653 = vrot.slane %v651, 7
  %v655 = vsub.f32 %v648, %v653
  %v656 = vld [vmem:[%s3] sm:$0x1]
  %v657 = vadd.f32 %v655, 1e-05
  %v658 = vrsqrt.pop %v657
  %v661 = vunpack.c.l.s4 1966171168
  %v662 = vunpack.c.0.s8 %v661
  %v663 = vlaneseq
  %v664 = vshrl.u32 %v663, 7
  %v665 = vsub.s32 %v662, %v664
  %v666 = vrot.slane %v658, %v665
  %v667 = vcombine.high %v666, %v666
  %v669 = vunpack.c.l.s4 1966171168
  %v670 = vunpack.c.0.s8 %v669
  %v671 = vlaneseq
  %v672 = vshrl.u32 %v671, 7
  %v673 = vsub.s32 %v670, %v672
  %v674 = vrot.slane %v667, %v673
  %v676 = vmul.f32 %v656, %v674
  %v677 = vld [vmem:[%s4] sm:$0x1]
  %v678 = vmul.f32 %v648, %v676
  %v679 = vsub.f32 %v677, %v678
  %v681 = vlaneseq
  %v682 = vshrl.u32 %v681, 7
  %v683 = vsub.s32 0, %v682
  %v684 = vrot.slane %v676, %v683
  %v686 = vmul.f32 %v540, %v684
  %v687 = vmul.f32 %v545, %v684
  %v688 = vmul.f32 %v550, %v684
  %v689 = vmul.f32 %v555, %v684
  %v691 = vlaneseq
  %v692 = vshrl.u32 %v691, 7
  %v693 = vsub.s32 0, %v692
  %v694 = vrot.slane %v679, %v693
  %v696 = vadd.f32 %v686, %v694
  %v697 = vadd.f32 %v687, %v694
  %v698 = vadd.f32 %v688, %v694
  %v699 = vadd.f32 %v689, %v694
  %v700 = vmax.f32 %v696, 0.0
  %v701 = vmax.f32 %v697, 0.0
  %v702 = vmax.f32 %v698, 0.0
  %v703 = vmax.f32 %v699, 0.0
  %704 = vst [vmem:[#allocation2 + $0x8] sm:$0xff] %v700
  %705 = vst [vmem:[#allocation2 + $0x20] sm:$0xff] %v701
  %706 = vst [vmem:[#allocation2 + $0x38] sm:$0xff] %v702
  %707 = vst [vmem:[#allocation2 + $0x50] sm:$0xff] %v703
  %v708 = vld [vmem:[#allocation2 + $0x9] ss:$0 sm:$0xff]
  %709 = vst [vmem:[#allocation2] sm:$0x1] %v708
  %v710 = vld [vmem:[#allocation2 + $0x8] sm:$0xff]
  %v711 = vld [vmem:[#allocation2 + $0x20] sm:$0x7f]
  %v714 = vrot.slane %v710, 7
  %v715 = vrot.slane %v711, 7
  %v716 = vsel %vm295, %v714, %v715
  %719 = vst [vmem:[#allocation2] sm:$0xfe] %v714
  %720 = vst [vmem:[#allocation2 + $0x18] sm:$0xff] %v716
  %v721 = vld [vmem:[#allocation2 + $0x8] sm:$0xfe]
  %v722 = vld [vmem:[#allocation2 + $0x20] sm:$0xff]
  %vm725 = vcmask 1046528
  %v726 = vrot.slane %v721, 1
  %v727 = vrot.slane %v722, 1
  %v728 = vsel %vm725, %v726, %v727
  %731 = vst [vmem:[#allocation2 + $0x10] sm:$0xff] %v728
  %732 = vst [vmem:[#allocation2 + $0x28] sm:$0x7f] %v727
  %v733 = vld [vmem:[#allocation2 + $0x26] ss:$0 sm:$0xff]
  %734 = vst [vmem:[#allocation2 + $0x2f] sm:$0x1] %v733
  %v735 = vld [vmem:[#allocation2 + $0x39] ss:$0 sm:$0xff]
  %736 = vst [vmem:[#allocation2 + $0x30] sm:$0x1] %v735
  %v737 = vld [vmem:[#allocation2 + $0x38] sm:$0xff]
  %v738 = vld [vmem:[#allocation2 + $0x50] sm:$0x7f]
  %v741 = vrot.slane %v737, 7
  %v742 = vrot.slane %v738, 7
  %v743 = vsel %vm295, %v741, %v742
  %746 = vst [vmem:[#allocation2 + $0x30] sm:$0xfe] %v741
  %747 = vst [vmem:[#allocation2 + $0x48] sm:$0xff] %v743
  %v748 = vld [vmem:[#allocation2 + $0x38] sm:$0xfe]
  %v749 = vld [vmem:[#allocation2 + $0x50] sm:$0xff]
  %v752 = vrot.slane %v748, 1
  %v753 = vrot.slane %v749, 1
  %v754 = vsel %vm725, %v752, %v753
  %757 = vst [vmem:[#allocation2 + $0x40] sm:$0xff] %v754
  %758 = vst [vmem:[#allocation2 + $0x58] sm:$0x7f] %v753
  %v759 = vld [vmem:[#allocation2 + $0x56] ss:$0 sm:$0xff]
  %760 = vst [vmem:[#allocation2 + $0x5f] sm:$0x1] %v759
  %v761 = vld [vmem:[#allocation2] sm:$0xff]
  %v762 = vld [vmem:[#allocation2 + $0x8] sm:$0xff]
  %v763 = vld [vmem:[#allocation2 + $0x10] sm:$0xff]
  %v764 = vld [vmem:[#allocation2 + $0x18] sm:$0xff]
  %v765 = vld [vmem:[#allocation2 + $0x20] sm:$0xff]
  %v766 = vld [vmem:[#allocation2 + $0x28] sm:$0xff]
  %v767 = vld [vmem:[#allocation2 + $0x30] sm:$0xff]
  %v768 = vld [vmem:[#allocation2 + $0x38] sm:$0xff]
  %v769 = vld [vmem:[#allocation2 + $0x40] sm:$0xff]
  %v770 = vld [vmem:[#allocation2 + $0x48] sm:$0xff]
  %v771 = vld [vmem:[#allocation2 + $0x50] sm:$0xff]
  %v772 = vld [vmem:[#allocation2 + $0x58] sm:$0xff]
  %v773 = vld [vmem:[%s2] sm:$0xff]
  %v774 = vld [vmem:[%s2 + $0x8] sm:$0xff]
  %v775 = vld [vmem:[%s2 + $0x10] sm:$0xff]
  %v776 = vld [vmem:[%s2 + $0x18] sm:$0xff]
  %v777 = vld [vmem:[%s2 + $0x20] sm:$0xff]
  %v778 = vld [vmem:[%s2 + $0x28] sm:$0xff]
  %v779 = vld [vmem:[%s2 + $0x30] sm:$0xff]
  %v780 = vld [vmem:[%s2 + $0x38] sm:$0xff]
  %v781 = vld [vmem:[%s2 + $0x40] sm:$0xff]
  %v782 = vld [vmem:[%s2 + $0x48] sm:$0xff]
  %v783 = vld [vmem:[%s2 + $0x50] sm:$0xff]
  %v784 = vld [vmem:[%s2 + $0x58] sm:$0xff]
  %v785 = vld [vmem:[%s2 + $0x60] sm:$0xff]
  %v786 = vld [vmem:[%s2 + $0x68] sm:$0xff]
  %v787 = vld [vmem:[%s2 + $0x70] sm:$0xff]
  %v788 = vld [vmem:[%s2 + $0x78] sm:$0xff]
  %v789 = vld [vmem:[%s2 + $0x80] sm:$0xff]
  %v790 = vld [vmem:[%s2 + $0x88] sm:$0xff]
  %v791 = vld [vmem:[%s2 + $0x90] sm:$0xff]
  %v792 = vld [vmem:[%s2 + $0x98] sm:$0xff]
  %v793 = vld [vmem:[%s2 + $0xa0] sm:$0xff]
  %v794 = vld [vmem:[%s2 + $0xa8] sm:$0xff]
  %v795 = vld [vmem:[%s2 + $0xb0] sm:$0xff]
  %v796 = vld [vmem:[%s2 + $0xb8] sm:$0xff]
  %v797 = vld [vmem:[%s2 + $0xc0] sm:$0xff]
  %v798 = vld [vmem:[%s2 + $0xc8] sm:$0xff]
  %v799 = vld [vmem:[%s2 + $0xd0] sm:$0xff]
  %v800 = vld [vmem:[%s2 + $0xd8] sm:$0xff]
  %v801 = vld [vmem:[%s2 + $0xe0] sm:$0xff]
  %v802 = vld [vmem:[%s2 + $0xe8] sm:$0xff]
  %v803 = vld [vmem:[%s2 + $0xf0] sm:$0xff]
  %v804 = vld [vmem:[%s2 + $0xf8] sm:$0xff]
  %v805 = vld [vmem:[%s2 + $0x100] sm:$0xff]
  %v806 = vld [vmem:[%s2 + $0x108] sm:$0xff]
  %v807 = vld [vmem:[%s2 + $0x110] sm:$0xff]
  %v808 = vld [vmem:[%s2 + $0x118] sm:$0xff]
  %v809 = vld [vmem:[%s2 + $0x120] sm:$0xff]
  %v810 = vld [vmem:[%s2 + $0x128] sm:$0xff]
  %v811 = vld [vmem:[%s2 + $0x130] sm:$0xff]
  %v812 = vld [vmem:[%s2 + $0x138] sm:$0xff]
  %v813 = vld [vmem:[%s2 + $0x140] sm:$0xff]
  %v814 = vld [vmem:[%s2 + $0x148] sm:$0xff]
  %v815 = vld [vmem:[%s2 + $0x150] sm:$0xff]
  %v816 = vld [vmem:[%s2 + $0x158] sm:$0xff]
  %v817 = vld [vmem:[%s2 + $0x160] sm:$0xff]
  %v818 = vld [vmem:[%s2 + $0x168] sm:$0xff]
  %v819 = vld [vmem:[%s2 + $0x170] sm:$0xff]
  %v820 = vld [vmem:[%s2 + $0x178] sm:$0xff]
  %821 = vmatprep.subr.mxu0 0.0
  %822 = vmatpush1.msra.mxu0 %v788
  %823 = vmatprep.subr.mxu0 0.0
  %824 = vmatpush1.msra.mxu0 %v787
  %825 = vmatprep.subr.mxu0 0.0
  %826 = vmatpush1.msra.mxu0 %v786
  %827 = vmatprep.subr.mxu0 0.0
  %828 = vmatpush1.msra.mxu0 %v785
  %829 = vmatprep.subr.mxu0 0.0
  %830 = vmatpush1.msra.mxu0 %v784
  %831 = vmatprep.subr.mxu0 0.0
  %832 = vmatpush1.msra.mxu0 %v783
  %833 = vmatprep.subr.mxu0 0.0
  %834 = vmatpush1.msra.mxu0 %v782
  %835 = vmatprep.subr.mxu0 0.0
  %836 = vmatpush1.msra.mxu0 %v781
  %837 = vmatprep.subr.mxu0 0.0
  %838 = vmatpush1.msra.mxu0 %v780
  %839 = vmatprep.subr.mxu0 0.0
  %840 = vmatpush1.msra.mxu0 %v779
  %841 = vmatprep.subr.mxu0 0.0
  %842 = vmatpush1.msra.mxu0 %v778
  %843 = vmatprep.subr.mxu0 0.0
  %844 = vmatpush1.msra.mxu0 %v777
  %845 = vmatprep.subr.mxu0 0.0
  %846 = vmatpush1.msra.mxu0 %v776
  %847 = vmatprep.subr.mxu0 0.0
  %848 = vmatpush1.msra.mxu0 %v775
  %849 = vmatprep.subr.mxu0 0.0
  %850 = vmatpush1.msra.mxu0 %v774
  %851 = vmatprep.subr.mxu0 0.0
  %852 = vmatpush1.msra.mxu0 %v773
  %853 = vmatprep.subr.mxu0 0.0
  %854 = vmatpush2.msra.mxu0 %v804
  %855 = vmatprep.subr.mxu0 0.0
  %856 = vmatpush2.msra.mxu0 %v803
  %857 = vmatprep.subr.mxu0 0.0
  %858 = vmatpush2.msra.mxu0 %v802
  %859 = vmatprep.subr.mxu0 0.0
  %860 = vmatpush2.msra.mxu0 %v801
  %861 = vmatprep.subr.mxu0 0.0
  %862 = vmatpush2.msra.mxu0 %v800
  %863 = vmatprep.subr.mxu0 0.0
  %864 = vmatpush2.msra.mxu0 %v799
  %865 = vmatprep.subr.mxu0 0.0
  %866 = vmatpush2.msra.mxu0 %v798
  %867 = vmatprep.subr.mxu0 0.0
  %868 = vmatpush2.msra.mxu0 %v797
  %869 = vmatprep.subr.mxu0 0.0
  %870 = vmatpush2.msra.mxu0 %v796
  %871 = vmatprep.subr.mxu0 0.0
  %872 = vmatpush2.msra.mxu0 %v795
  %873 = vmatprep.subr.mxu0 0.0
  %874 = vmatpush2.msra.mxu0 %v794
  %875 = vmatprep.subr.mxu0 0.0
  %876 = vmatpush2.msra.mxu0 %v793
  %877 = vmatprep.subr.mxu0 0.0
  %878 = vmatpush2.msra.mxu0 %v792
  %879 = vmatprep.subr.mxu0 0.0
  %880 = vmatpush2.msra.mxu0 %v791
  %881 = vmatprep.subr.mxu0 0.0
  %882 = vmatpush2.msra.mxu0 %v790
  %883 = vmatprep.subr.mxu0 0.0
  %884 = vmatpush2.msra.mxu0 %v789
  %885 = vmatprep.mubr.f32.mxu0 %v762
  %886 = vmatmul.mubr.f32.gmra.mxu0 %v761
  %v887 = vpop.f32.mrf.mxu0
  %v888 = vadd.f32 0.0, %v887
  %v889 = vpop.f32.mrf.mxu0
  %890 = vmatprep.mubr.f32.mxu0 %v765
  %891 = vmatmul.mubr.f32.gmra.mxu0 %v764
  %v892 = vpop.f32.mrf.mxu0
  %v893 = vadd.f32 0.0, %v892
  %v894 = vpop.f32.mrf.mxu0
  %895 = vmatprep.mubr.f32.mxu0 %v768
  %896 = vmatmul.mubr.f32.gmra.mxu0 %v767
  %v897 = vpop.f32.mrf.mxu0
  %v898 = vadd.f32 0.0, %v897
  %v899 = vpop.f32.mrf.mxu0
  %900 = vmatprep.mubr.f32.mxu0 %v771
  %901 = vmatmul.mubr.f32.gmra.mxu0 %v770
  %v902 = vpop.f32.mrf.mxu0
  %v903 = vadd.f32 0.0, %v902
  %v904 = vpop.f32.mrf.mxu0
  %905 = vdwg.mxu0
  %906 = vmatprep.subr.mxu0 0.0
  %907 = vmatpush1.msra.mxu0 %v820
  %908 = vmatprep.subr.mxu0 0.0
  %909 = vmatpush1.msra.mxu0 %v819
  %910 = vmatprep.subr.mxu0 0.0
  %911 = vmatpush1.msra.mxu0 %v818
  %912 = vmatprep.subr.mxu0 0.0
  %913 = vmatpush1.msra.mxu0 %v817
  %914 = vmatprep.subr.mxu0 0.0
  %915 = vmatpush1.msra.mxu0 %v816
  %916 = vmatprep.subr.mxu0 0.0
  %917 = vmatpush1.msra.mxu0 %v815
  %918 = vmatprep.subr.mxu0 0.0
  %919 = vmatpush1.msra.mxu0 %v814
  %920 = vmatprep.subr.mxu0 0.0
  %921 = vmatpush1.msra.mxu0 %v813
  %922 = vmatprep.subr.mxu0 0.0
  %923 = vmatpush1.msra.mxu0 %v812
  %924 = vmatprep.subr.mxu0 0.0
  %925 = vmatpush1.msra.mxu0 %v811
  %926 = vmatprep.subr.mxu0 0.0
  %927 = vmatpush1.msra.mxu0 %v810
  %928 = vmatprep.subr.mxu0 0.0
  %929 = vmatpush1.msra.mxu0 %v809
  %930 = vmatprep.subr.mxu0 0.0
  %931 = vmatpush1.msra.mxu0 %v808
  %932 = vmatprep.subr.mxu0 0.0
  %933 = vmatpush1.msra.mxu0 %v807
  %934 = vmatprep.subr.mxu0 0.0
  %935 = vmatpush1.msra.mxu0 %v806
  %936 = vmatprep.subr.mxu0 0.0
  %937 = vmatpush1.msra.mxu0 %v805
  %938 = vmatprep.subr.mxu0 0.0
  %939 = vmatpush2.msra.mxu0 0.0
  %940 = vmatprep.subr.mxu0 0.0
  %941 = vmatpush2.msra.mxu0 0.0
  %942 = vmatprep.subr.mxu0 0.0
  %943 = vmatpush2.msra.mxu0 0.0
  %944 = vmatprep.subr.mxu0 0.0
  %945 = vmatpush2.msra.mxu0 0.0
  %946 = vmatprep.subr.mxu0 0.0
  %947 = vmatpush2.msra.mxu0 0.0
  %948 = vmatprep.subr.mxu0 0.0
  %949 = vmatpush2.msra.mxu0 0.0
  %950 = vmatprep.subr.mxu0 0.0
  %951 = vmatpush2.msra.mxu0 0.0
  %952 = vmatprep.subr.mxu0 0.0
  %953 = vmatpush2.msra.mxu0 0.0
  %954 = vmatprep.subr.mxu0 0.0
  %955 = vmatpush2.msra.mxu0 0.0
  %956 = vmatprep.subr.mxu0 0.0
  %957 = vmatpush2.msra.mxu0 0.0
  %958 = vmatprep.subr.mxu0 0.0
  %959 = vmatpush2.msra.mxu0 0.0
  %960 = vmatprep.subr.mxu0 0.0
  %961 = vmatpush2.msra.mxu0 0.0
  %962 = vmatprep.subr.mxu0 0.0
  %963 = vmatpush2.msra.mxu0 0.0
  %964 = vmatprep.subr.mxu0 0.0
  %965 = vmatpush2.msra.mxu0 0.0
  %966 = vmatprep.subr.mxu0 0.0
  %967 = vmatpush2.msra.mxu0 0.0
  %968 = vmatprep.subr.mxu0 0.0
  %969 = vmatpush2.msra.mxu0 0.0
  %970 = vmatprep.mubr.f32.mxu0 0.0
  %971 = vmatmul.mubr.f32.gmra.mxu0 %v763
  %v972 = vpop.f32.mrf.mxu0
  %v973 = vadd.f32 %v888, %v972
  %v974 = vpop.f32.mrf.mxu0
  %975 = vmatprep.mubr.f32.mxu0 0.0
  %976 = vmatmul.mubr.f32.gmra.mxu0 %v766
  %v977 = vpop.f32.mrf.mxu0
  %v978 = vadd.f32 %v893, %v977
  %v979 = vpop.f32.mrf.mxu0
  %980 = vmatprep.mubr.f32.mxu0 0.0
  %981 = vmatmul.mubr.f32.gmra.mxu0 %v769
  %v982 = vpop.f32.mrf.mxu0
  %v983 = vadd.f32 %v898, %v982
  %v984 = vpop.f32.mrf.mxu0
  %985 = vmatprep.mubr.f32.mxu0 0.0
  %986 = vmatmul.mubr.f32.gmra.mxu0 %v772
  %v987 = vpop.f32.mrf.mxu0
  %v988 = vadd.f32 %v903, %v987
  %v989 = vpop.f32.mrf.mxu0
  %990 = vdwg.mxu0
  %v991 = vadd.f32 %v973, %v978
  %v992 = vadd.f32 %v991, %v983
  %v993 = vadd.f32 %v992, %v988
  %v994 = vrot.slane %v993, 4
  %v995 = vadd.f32 %v993, %v994
  %v996 = vrot.slane %v995, 2
  %v997 = vadd.f32 %v995, %v996
  %v998 = vrot.slane %v997, 1
  %v999 = vadd.f32 %v997, %v998
  %v1000 = vmul.f32 %v973, %v973
  %v1001 = vmul.f32 %v978, %v978
  %v1002 = vmul.f32 %v983, %v983
  %v1003 = vmul.f32 %v988, %v988
  %v1004 = vadd.f32 %v1000, %v1001
  %v1005 = vadd.f32 %v1004, %v1002
  %v1006 = vadd.f32 %v1005, %v1003
  %v1007 = vrot.slane %v1006, 4
  %v1008 = vadd.f32 %v1006, %v1007
  %v1009 = vrot.slane %v1008, 2
  %v1010 = vadd.f32 %v1008, %v1009
  %v1011 = vrot.slane %v1010, 1
  %v1012 = vadd.f32 %v1010, %v1011
  %v1013 = vsel %vm295, %v999, %v1012
  %1014 = vmatprep.subr.mxu0 0.0
  %1015 = vmatpush1.msra.mxu0 %v280
  %1016 = vmatprep.subr.mxu0 0.0
  %1017 = vmatpush1.msra.mxu0 %v279
  %1018 = vmatprep.subr.mxu0 0.0
  %1019 = vmatpush1.msra.mxu0 %v278
  %1020 = vmatprep.subr.mxu0 0.0
  %1021 = vmatpush1.msra.mxu0 %v277
  %1022 = vmatprep.subr.mxu0 0.0
  %1023 = vmatpush1.msra.mxu0 %v276
  %1024 = vmatprep.subr.mxu0 0.0
  %1025 = vmatpush1.msra.mxu0 %v275
  %1026 = vmatprep.subr.mxu0 0.0
  %1027 = vmatpush1.msra.mxu0 %v274
  %1028 = vmatprep.subr.mxu0 0.0
  %1029 = vmatpush1.msra.mxu0 %v273
  %1030 = vmatprep.subr.mxu0 0.0
  %1031 = vmatpush1.msra.mxu0 %v272
  %1032 = vmatprep.subr.mxu0 0.0
  %1033 = vmatpush1.msra.mxu0 %v271
  %1034 = vmatprep.subr.mxu0 0.0
  %1035 = vmatpush1.msra.mxu0 %v270
  %1036 = vmatprep.subr.mxu0 0.0
  %1037 = vmatpush1.msra.mxu0 %v269
  %1038 = vmatprep.subr.mxu0 0.0
  %1039 = vmatpush1.msra.mxu0 %v268
  %1040 = vmatprep.subr.mxu0 0.0
  %1041 = vmatpush1.msra.mxu0 %v267
  %1042 = vmatprep.subr.mxu0 0.0
  %1043 = vmatpush1.msra.mxu0 %v266
  %1044 = vmatprep.subr.mxu0 0.0
  %1045 = vmatpush1.msra.mxu0 %v265
  %1046 = vmatprep.subr.mxu0 0.0
  %1047 = vmatpush2.msra.mxu0 0.0
  %1048 = vmatprep.subr.mxu0 0.0
  %1049 = vmatpush2.msra.mxu0 0.0
  %1050 = vmatprep.subr.mxu0 0.0
  %1051 = vmatpush2.msra.mxu0 0.0
  %1052 = vmatprep.subr.mxu0 0.0
  %1053 = vmatpush2.msra.mxu0 0.0
  %1054 = vmatprep.subr.mxu0 0.0
  %1055 = vmatpush2.msra.mxu0 0.0
  %1056 = vmatprep.subr.mxu0 0.0
  %1057 = vmatpush2.msra.mxu0 0.0
  %1058 = vmatprep.subr.mxu0 0.0
  %1059 = vmatpush2.msra.mxu0 0.0
  %1060 = vmatprep.subr.mxu0 0.0
  %1061 = vmatpush2.msra.mxu0 0.0
  %1062 = vmatprep.subr.mxu0 0.0
  %1063 = vmatpush2.msra.mxu0 0.0
  %1064 = vmatprep.subr.mxu0 0.0
  %1065 = vmatpush2.msra.mxu0 0.0
  %1066 = vmatprep.subr.mxu0 0.0
  %1067 = vmatpush2.msra.mxu0 0.0
  %1068 = vmatprep.subr.mxu0 0.0
  %1069 = vmatpush2.msra.mxu0 0.0
  %1070 = vmatprep.subr.mxu0 0.0
  %1071 = vmatpush2.msra.mxu0 0.0
  %1072 = vmatprep.subr.mxu0 0.0
  %1073 = vmatpush2.msra.mxu0 0.0
  %1074 = vmatprep.subr.mxu0 0.0
  %1075 = vmatpush2.msra.mxu0 0.0
  %1076 = vmatprep.subr.mxu0 0.0
  %1077 = vmatpush2.msra.mxu0 0.0
  %1078 = vmatprep.mubr.f32.mxu0 0.0
  %1079 = vmatmul.mubr.f32.gmra.mxu0 %v1013
  %v1080 = vpop.f32.mrf.mxu0
  %v1081 = vadd.f32 0.0, %v1080
  %v1082 = vpop.f32.mrf.mxu0
  %1083 = vdwg.mxu0
  %v1084 = vmul.f32 %v1081, %v1081
  %v1086 = vrot.slane %v1084, 7
  %v1088 = vsub.f32 %v1081, %v1086
  %v1089 = vld [vmem:[%s5] sm:$0x1]
  %v1090 = vadd.f32 %v1088, 1e-05
  %v1091 = vrsqrt.pop %v1090
  %v1094 = vunpack.c.l.s4 1966171168
  %v1095 = vunpack.c.0.s8 %v1094
  %v1096 = vlaneseq
  %v1097 = vshrl.u32 %v1096, 7
  %v1098 = vsub.s32 %v1095, %v1097
  %v1099 = vrot.slane %v1091, %v1098
  %v1100 = vcombine.high %v1099, %v1099
  %v1102 = vunpack.c.l.s4 1966171168
  %v1103 = vunpack.c.0.s8 %v1102
  %v1104 = vlaneseq
  %v1105 = vshrl.u32 %v1104, 7
  %v1106 = vsub.s32 %v1103, %v1105
  %v1107 = vrot.slane %v1100, %v1106
  %v1109 = vmul.f32 %v1089, %v1107
  %v1110 = vld [vmem:[%s6] sm:$0x1]
  %v1111 = vmul.f32 %v1081, %v1109
  %v1112 = vsub.f32 %v1110, %v1111
  %v1114 = vlaneseq
  %v1115 = vshrl.u32 %v1114, 7
  %v1116 = vsub.s32 0, %v1115
  %v1117 = vrot.slane %v1109, %v1116
  %v1119 = vmul.f32 %v973, %v1117
  %v1120 = vmul.f32 %v978, %v1117
  %v1121 = vmul.f32 %v983, %v1117
  %v1122 = vmul.f32 %v988, %v1117
  %v1124 = vlaneseq
  %v1125 = vshrl.u32 %v1124, 7
  %v1126 = vsub.s32 0, %v1125
  %v1127 = vrot.slane %v1112, %v1126
  %v1129 = vadd.f32 %v1119, %v1127
  %v1130 = vadd.f32 %v1120, %v1127
  %v1131 = vadd.f32 %v1121, %v1127
  %v1132 = vadd.f32 %v1122, %v1127
  %v1133 = vadd.f32 %v1129, %v281
  %v1134 = vadd.f32 %v1130, %v282
  %v1135 = vadd.f32 %v1131, %v283
  %v1136 = vadd.f32 %v1132, %v284
  %v1137 = vmax.f32 %v1133, 0.0
  %v1138 = vmax.f32 %v1134, 0.0
  %v1139 = vmax.f32 %v1135, 0.0
  %v1140 = vmax.f32 %v1136, 0.0
  %1141 = vst [vmem:[%s7] sm:$0xff] %v1137
  %1142 = vst [vmem:[%s7 + $0x8] sm:$0xff] %v1138
  %1143 = vst [vmem:[%s7 + $0x10] sm:$0xff] %v1139
  %1144 = vst [vmem:[%s7 + $0x18] sm:$0xff] %v1140
  // Predicated region
  $region30: #{basic_block_forward.1} parent=0 // pred_check
    _
  $region31: #{basic_block_forward.1} parent=0 // pred_check_branch
    %1146 = sbr.rel (0) target = $region33
  $region32: #{basic_block_forward.1} parent=0 // pred_region
    _
  $region33: #{basic_block_forward.1} parent=0 // pred_fallthru
    _
  // Predicated region
  $region34: #{basic_block_forward.1} parent=0 // pred_check
    _
  $region35: #{basic_block_forward.1} parent=0 // pred_check_branch
    %1148 = sbr.rel (0) target = $region37
  $region36: #{basic_block_forward.1} parent=0 // pred_region
    _
  $region37: #{basic_block_forward.1} parent=0 // pred_fallthru
    _

</llo_original>
